<compile_context>
chip_gen: v7x
topology: tpu7x:2x2x1
jax: 0.10.0
libtpu: 0.0.40
codegen_flags: <defaults>
</compile_context>

<pallas_src>
import jax
import jax.numpy as jnp
from jax.experimental import pallas as pl
from jax.experimental.pallas import tpu as pltpu


# ---------------------------------------------------------------------------
# Model dimensions (synthetic, deterministic init)
# ---------------------------------------------------------------------------
COORD_DIM = 2        # INR input: 2-D spatial coordinates
INR_HIDDEN = 32      # SIREN-style hidden width of the INR itself
INR_CHANNELS = 4     # channels produced by the INR (d_inr.values channels)
LAYER_HIDDEN = 32    # hidden width of self.layers channel-MLP
OUT_CHANNELS = 4     # output channels of self.layers
OMEGA = 30.0         # SIREN frequency

LANE = 128
MAX_POINT_TILE = 2048   # points (lanes) per grid step; sweet spot 1024-2048


# ---------------------------------------------------------------------------
# Pallas kernel: fused  INR-eval  +  layers(d_inr)  for one tile of points
# (channels-first: every ref is (channels, points) so the lane axis is dense)
# ---------------------------------------------------------------------------
def inrnet_kernel(coords_ref,                 # (COORD_DIM, T)
                  w0t_ref, b0t_ref,           # SIREN layer 0 (OMEGA folded in)
                  wmid_ref, bmid_ref,         # folded (w1 @ wl0), (b1@wl0+bl0)
                  wl1t_ref, bl1t_ref,         # final Linear of self.layers
                  out_ref):                   # (OUT_CHANNELS, T)
    c = coords_ref[...]                                       # (2, T)
    w0t = w0t_ref[...]                                        # (32, 2)

    # --- sample_inr: values = inr(coords)  (SIREN layer 0) ---
    # K=2 contraction kept on the VPU as broadcast multiply-adds; OMEGA is
    # already folded into w0t / b0t.
    h = w0t[:, 0:1] * c[0:1, :] + w0t[:, 1:2] * c[1:2, :]     # (32, T)
    h = jnp.sin(h + b0t_ref[...])                             # (32, T)

    # --- INR output proj + layers' first Linear folded into one matmul ---
    z = jnp.dot(wmid_ref[...], h, preferred_element_type=jnp.float32)
    z = jnp.maximum(z + bmid_ref[...], 0.0)                   # (32, T)

    # --- layers' final Linear ---
    o = jnp.dot(wl1t_ref[...], z, preferred_element_type=jnp.float32)
    out_ref[...] = (o + bl1t_ref[...]).astype(out_ref.dtype)  # (4, T)


def _round_up(x, m):
    return (x + m - 1) // m * m


def _choose_tile(n_points):
    """Pick a lane-dense point tile: big (overhead amortization) but keeping
    the grid >= 2 steps when possible (v7x has 2 TensorCores per chip)."""
    n128 = max(LANE, _round_up(n_points, LANE))
    tile = min(MAX_POINT_TILE, n128)
    if n128 // tile < 2 and n128 >= 2 * LANE:
        tile = (n128 // 2) // LANE * LANE
    return tile


def _param_spec(shape):
    # tiny parameter tensors: single block, resident every grid step
    return pl.BlockSpec(shape, lambda i: (0, 0))


def inrnet_forward(coords_flat, fused_params):
    """coords_flat: (P, 2) f32  ->  (P, OUT_CHANNELS) f32."""
    n = coords_flat.shape[0]
    tile = _choose_tile(n)
    n_pad = _round_up(max(n, LANE), tile)
    grid = (n_pad // tile,)

    # channels-first, lane-dense layout (layout plumbing, done once outside)
    coords_t = jnp.zeros((COORD_DIM, n_pad), jnp.float32)
    coords_t = coords_t.at[:, :n].set(coords_flat.T)

    (w0t, b0t, wmid_t, bmid_t, wl1t, bl1t) = fused_params

    flops = 2 * n_pad * (COORD_DIM * INR_HIDDEN
                         + INR_HIDDEN * LAYER_HIDDEN
                         + LAYER_HIDDEN * OUT_CHANNELS)
    bytes_accessed = 4 * n_pad * (COORD_DIM + OUT_CHANNELS) + sum(
        4 * int(p.size) for p in fused_params)

    out_t = pl.pallas_call(
        inrnet_kernel,
        out_shape=jax.ShapeDtypeStruct((OUT_CHANNELS, n_pad), jnp.float32),
        grid_spec=pltpu.PrefetchScalarGridSpec(
            num_scalar_prefetch=0,
            grid=grid,
            in_specs=[
                pl.BlockSpec((COORD_DIM, tile), lambda i: (0, i)),
                _param_spec(w0t.shape), _param_spec(b0t.shape),
                _param_spec(wmid_t.shape), _param_spec(bmid_t.shape),
                _param_spec(wl1t.shape), _param_spec(bl1t.shape),
            ],
            out_specs=pl.BlockSpec((OUT_CHANNELS, tile), lambda i: (0, i)),
        ),
        compiler_params=pltpu.CompilerParams(
            dimension_semantics=("parallel",)),
        cost_estimate=pl.CostEstimate(
            flops=flops,
            transcendentals=n_pad * INR_HIDDEN,
            bytes_accessed=bytes_accessed),
    )(coords_t, w0t, b0t, wmid_t, bmid_t, wl1t, bl1t)

    return out_t[:, :n].T                      # back to (P, OUT_CHANNELS)


# ---------------------------------------------------------------------------
# Glue: sampler (grid coordinate generation) + parameter init / folding
# ---------------------------------------------------------------------------
def generate_grid_coords(batch, H, W, domain=(-1.0, 1.0)):
    """sampler = {'sample type': 'grid', 'dims': (H, W)} over `domain`."""
    ys = jnp.linspace(domain[0], domain[1], H, dtype=jnp.float32)
    xs = jnp.linspace(domain[0], domain[1], W, dtype=jnp.float32)
    gy, gx = jnp.meshgrid(ys, xs, indexing="ij")
    coords = jnp.stack([gy.ravel(), gx.ravel()], axis=-1)      # (H*W, 2)
    return jnp.broadcast_to(coords[None], (batch, H * W, 2))   # (B, N, 2)


def init_params(key):
    k = jax.random.split(key, 8)
    def lin(kw, fan_in, fan_out):
        scale = 1.0 / jnp.sqrt(jnp.float32(fan_in))
        return jax.random.uniform(kw, (fan_in, fan_out), jnp.float32,
                                  -scale, scale)
    w0 = lin(k[0], COORD_DIM, INR_HIDDEN)
    b0 = jax.random.uniform(k[1], (1, INR_HIDDEN), jnp.float32, -0.1, 0.1)
    w1 = lin(k[2], INR_HIDDEN, INR_CHANNELS)
    b1 = jax.random.uniform(k[3], (1, INR_CHANNELS), jnp.float32, -0.1, 0.1)
    wl0 = lin(k[4], INR_CHANNELS, LAYER_HIDDEN)
    bl0 = jax.random.uniform(k[5], (1, LAYER_HIDDEN), jnp.float32, -0.1, 0.1)
    wl1 = lin(k[6], LAYER_HIDDEN, OUT_CHANNELS)
    bl1 = jax.random.uniform(k[7], (1, OUT_CHANNELS), jnp.float32, -0.1, 0.1)
    return (w0, b0, w1, b1, wl0, bl0, wl1, bl1)


def fuse_params(params):
    """One-time algebraic folds (init-time, not per-call):
      * OMEGA folded into SIREN layer-0 weights/bias,
      * the two adjacent ReLU-free linears (w1, wl0) folded into one matrix,
      * all matrices transposed for the channels-first kernel layout."""
    (w0, b0, w1, b1, wl0, bl0, wl1, bl1) = params
    w0t = (OMEGA * w0).T                    # (INR_HIDDEN, COORD_DIM)
    b0t = (OMEGA * b0).T                    # (INR_HIDDEN, 1)
    wmid_t = (w1 @ wl0).T                   # (LAYER_HIDDEN, INR_HIDDEN)
    bmid_t = (b1 @ wl0 + bl0).T             # (LAYER_HIDDEN, 1)
    wl1t = wl1.T                            # (OUT_CHANNELS, LAYER_HIDDEN)
    bl1t = bl1.T                            # (OUT_CHANNELS, 1)
    return (w0t, b0t, wmid_t, bmid_t, wl1t, bl1t)


def reference_forward(coords_flat, params):
    """Pure-JAX reference of the original (unfolded) math."""
    (w0, b0, w1, b1, wl0, bl0, wl1, bl1) = params
    h = jnp.sin(OMEGA * (coords_flat @ w0 + b0))
    v = h @ w1 + b1
    z = jnp.maximum(v @ wl0 + bl0, 0.0)
    return z @ wl1 + bl1


# TODO(synk): `produce_images`'s util.sort_inr (coordinate re-sorting) is a
# no-op for an already-ordered grid sampler and is not implemented here.

if __name__ == "__main__":
    key = jax.random.PRNGKey(0)
    params = init_params(key)
    fused = fuse_params(params)

    B, H, W = 2, 16, 16
    coords = generate_grid_coords(B, H, W)            # (2, 256, 2)
    coords_flat = coords.reshape(-1, COORD_DIM)       # (512, 2)

    out_flat = inrnet_forward(coords_flat, fused)     # (512, 4)
    out_flat = jax.block_until_ready(out_flat)

    # DiscretizedINR values: (B, N, C);  produce_images layout: (B, C, H, W)
    values = out_flat.reshape(B, H * W, OUT_CHANNELS)
    images = values.reshape(B, H, W, OUT_CHANNELS).transpose(0, 3, 1, 2)
    jax.block_until_ready(images)

    ref = reference_forward(coords_flat, params)
    assert jnp.allclose(out_flat, ref, atol=2e-4, rtol=2e-4), "mismatch vs ref"
    assert images.shape == (B, OUT_CHANNELS, H, W)

    print("KERNEL_OK")
</pallas_src>

<mosaic_0001>
module attributes {stable_mosaic.version = 11 : i64} {
  func.func @inrnet_kernel(%arg0: i32, %arg1: memref<2x256xf32, #tpu.memory_space<vmem>>, %arg2: memref<32x2xf32, #tpu.memory_space<vmem>>, %arg3: memref<32x1xf32, #tpu.memory_space<vmem>>, %arg4: memref<32x32xf32, #tpu.memory_space<vmem>>, %arg5: memref<32x1xf32, #tpu.memory_space<vmem>>, %arg6: memref<4x32xf32, #tpu.memory_space<vmem>>, %arg7: memref<4x1xf32, #tpu.memory_space<vmem>>, %arg8: memref<4x256xf32, #tpu.memory_space<vmem>>) attributes {dimension_semantics = [#tpu.dimension_semantics<parallel>], iteration_bounds = array<i64: 2>, scalar_prefetch = 0 : i64, scratch_operands = 0 : i64, tpu.core_type = #tpu.core_type<tc>, window_params = [{transform_indices = @transform_0, window_bounds = array<i64: 2, 256>}, {pipeline_mode = #tpu.pipeline_mode<synchronous>, transform_indices = @transform_1, window_bounds = array<i64: 32, 2>}, {pipeline_mode = #tpu.pipeline_mode<synchronous>, transform_indices = @transform_2, window_bounds = array<i64: 32, 1>}, {pipeline_mode = #tpu.pipeline_mode<synchronous>, transform_indices = @transform_3, window_bounds = array<i64: 32, 32>}, {pipeline_mode = #tpu.pipeline_mode<synchronous>, transform_indices = @transform_4, window_bounds = array<i64: 32, 1>}, {pipeline_mode = #tpu.pipeline_mode<synchronous>, transform_indices = @transform_5, window_bounds = array<i64: 4, 32>}, {pipeline_mode = #tpu.pipeline_mode<synchronous>, transform_indices = @transform_6, window_bounds = array<i64: 4, 1>}, {transform_indices = @transform_7, window_bounds = array<i64: 4, 256>}]} {
    %c0 = arith.constant 0 : index
    %c0_0 = arith.constant 0 : index
    %0 = vector.load %arg1[%c0, %c0_0] : memref<2x256xf32, #tpu.memory_space<vmem>>, vector<2x256xf32>
    %c0_1 = arith.constant 0 : index
    %c0_2 = arith.constant 0 : index
    %1 = vector.load %arg2[%c0_1, %c0_2] : memref<32x2xf32, #tpu.memory_space<vmem>>, vector<32x2xf32>
    %2 = vector.extract_strided_slice %1 {offsets = [0, 0], sizes = [32, 1], strides = [1, 1]} : vector<32x2xf32> to vector<32x1xf32>
    %3 = vector.extract_strided_slice %0 {offsets = [0, 0], sizes = [1, 256], strides = [1, 1]} : vector<2x256xf32> to vector<1x256xf32>
    %4 = vector.broadcast %2 : vector<32x1xf32> to vector<32x256xf32>
    %5 = vector.broadcast %3 : vector<1x256xf32> to vector<32x256xf32>
    %6 = arith.mulf %4, %5 : vector<32x256xf32>
    %7 = vector.extract_strided_slice %1 {offsets = [0, 1], sizes = [32, 1], strides = [1, 1]} : vector<32x2xf32> to vector<32x1xf32>
    %8 = vector.extract_strided_slice %0 {offsets = [1, 0], sizes = [1, 256], strides = [1, 1]} : vector<2x256xf32> to vector<1x256xf32>
    %9 = vector.broadcast %7 : vector<32x1xf32> to vector<32x256xf32>
    %10 = vector.broadcast %8 : vector<1x256xf32> to vector<32x256xf32>
    %11 = arith.mulf %9, %10 : vector<32x256xf32>
    %12 = arith.addf %6, %11 : vector<32x256xf32>
    %c0_3 = arith.constant 0 : index
    %c0_4 = arith.constant 0 : index
    %13 = vector.load %arg3[%c0_3, %c0_4] : memref<32x1xf32, #tpu.memory_space<vmem>>, vector<32x1xf32>
    %14 = vector.broadcast %13 : vector<32x1xf32> to vector<32x256xf32>
    %15 = arith.addf %12, %14 : vector<32x256xf32>
    %16 = math.sin %15 : vector<32x256xf32>
    %c0_5 = arith.constant 0 : index
    %c0_6 = arith.constant 0 : index
    %17 = vector.load %arg4[%c0_5, %c0_6] : memref<32x32xf32, #tpu.memory_space<vmem>>, vector<32x32xf32>
    %cst = arith.constant dense<0.000000e+00> : vector<32x256xf32>
    %18 = tpu.matmul %17, %16, %cst {dimension_numbers = #tpu.dot_dimension_numbers<[1], [0], [0], [1], [0, 0, 1, 1], [], []>} : vector<32x32xf32>, vector<32x256xf32>, vector<32x256xf32> -> vector<32x256xf32>
    %c0_7 = arith.constant 0 : index
    %c0_8 = arith.constant 0 : index
    %19 = vector.load %arg5[%c0_7, %c0_8] : memref<32x1xf32, #tpu.memory_space<vmem>>, vector<32x1xf32>
    %20 = vector.broadcast %19 : vector<32x1xf32> to vector<32x256xf32>
    %21 = arith.addf %18, %20 : vector<32x256xf32>
    %cst_9 = arith.constant 0.000000e+00 : f32
    %22 = vector.broadcast %cst_9 : f32 to vector<32x256xf32>
    %23 = arith.maximumf %21, %22 : vector<32x256xf32>
    %c0_10 = arith.constant 0 : index
    %c0_11 = arith.constant 0 : index
    %24 = vector.load %arg6[%c0_10, %c0_11] : memref<4x32xf32, #tpu.memory_space<vmem>>, vector<4x32xf32>
    %cst_12 = arith.constant dense<0.000000e+00> : vector<4x256xf32>
    %25 = tpu.matmul %24, %23, %cst_12 {dimension_numbers = #tpu.dot_dimension_numbers<[1], [0], [0], [1], [0, 0, 1, 1], [], []>} : vector<4x32xf32>, vector<32x256xf32>, vector<4x256xf32> -> vector<4x256xf32>
    %c0_13 = arith.constant 0 : index
    %c0_14 = arith.constant 0 : index
    %26 = vector.load %arg7[%c0_13, %c0_14] : memref<4x1xf32, #tpu.memory_space<vmem>>, vector<4x1xf32>
    %27 = vector.broadcast %26 : vector<4x1xf32> to vector<4x256xf32>
    %28 = arith.addf %25, %27 : vector<4x256xf32>
    %c0_15 = arith.constant 0 : index
    %c0_16 = arith.constant 0 : index
    %29 = vector.load %arg8[%c0_15, %c0_16] : memref<4x256xf32, #tpu.memory_space<vmem>>, vector<4x256xf32>
    tpu.vector_store %arg8[%c0_15, %c0_16], %28 {strides = array<i32>} : memref<4x256xf32, #tpu.memory_space<vmem>>, vector<4x256xf32>,
    return
  }
  func.func @transform_0(%arg0: i32) -> (i32, i32) {
    %c0_i32 = arith.constant 0 : i32
    %c0_i32_0 = arith.constant 0 : i32
    return %c0_i32, %arg0 : i32, i32
  }
  func.func @transform_1(%arg0: i32) -> (i32, i32) {
    %c0_i32 = arith.constant 0 : i32
    %c0_i32_0 = arith.constant 0 : i32
    %c0_i32_1 = arith.constant 0 : i32
    return %c0_i32, %c0_i32_0 : i32, i32
  }
  func.func @transform_2(%arg0: i32) -> (i32, i32) {
    %c0_i32 = arith.constant 0 : i32
    %c0_i32_0 = arith.constant 0 : i32
    %c0_i32_1 = arith.constant 0 : i32
    return %c0_i32, %c0_i32_0 : i32, i32
  }
  func.func @transform_3(%arg0: i32) -> (i32, i32) {
    %c0_i32 = arith.constant 0 : i32
    %c0_i32_0 = arith.constant 0 : i32
    %c0_i32_1 = arith.constant 0 : i32
    return %c0_i32, %c0_i32_0 : i32, i32
  }
  func.func @transform_4(%arg0: i32) -> (i32, i32) {
    %c0_i32 = arith.constant 0 : i32
    %c0_i32_0 = arith.constant 0 : i32
    %c0_i32_1 = arith.constant 0 : i32
    return %c0_i32, %c0_i32_0 : i32, i32
  }
  func.func @transform_5(%arg0: i32) -> (i32, i32) {
    %c0_i32 = arith.constant 0 : i32
    %c0_i32_0 = arith.constant 0 : i32
    %c0_i32_1 = arith.constant 0 : i32
    return %c0_i32, %c0_i32_0 : i32, i32
  }
  func.func @transform_6(%arg0: i32) -> (i32, i32) {
    %c0_i32 = arith.constant 0 : i32
    %c0_i32_0 = arith.constant 0 : i32
    %c0_i32_1 = arith.constant 0 : i32
    return %c0_i32, %c0_i32_0 : i32, i32
  }
  func.func @transform_7(%arg0: i32) -> (i32, i32) {
    %c0_i32 = arith.constant 0 : i32
    %c0_i32_0 = arith.constant 0 : i32
    return %c0_i32, %arg0 : i32, i32
  }
}

</mosaic_0001>

<llo_original>
// kernel: tpu_custom_call.1
$region0: #{tpu_custom_call.1}
  #allocation0 [shape = 'u32[]', space=smem, size = 0x4, offset = 0x4, fixed_abs, tag = 'smem constant byte address 0x4 - core index']
  #allocation1 [shape = 'u32[144,128]{1,0:T(1,128)}', space=vmem, size = 0x12000, scoped, tag = 'internal scratch']
  %s0 = inlined_call_operand.vmem [shape: f32[2,512], index: 0, kind: input, shape index: {}]
  %s1 = inlined_call_operand.vmem [shape: f32[32,2], index: 1, kind: input, shape index: {}]
  %s2 = inlined_call_operand.vmem [shape: f32[32,1], index: 2, kind: input, shape index: {}]
  %s3 = inlined_call_operand.vmem [shape: f32[32,32], index: 3, kind: input, shape index: {}]
  %s4 = inlined_call_operand.vmem [shape: f32[32,1], index: 4, kind: input, shape index: {}]
  %s5 = inlined_call_operand.vmem [shape: f32[4,32], index: 5, kind: input, shape index: {}]
  %s6 = inlined_call_operand.vmem [shape: f32[4,1], index: 6, kind: input, shape index: {}]
  %s7 = inlined_call_operand.hbm [shape: f32[4,512], index: 7, kind: output, shape index: {}]
  %s8 = sld [smem:[#allocation0]]
  $region61: #{tpu_custom_call.1} parent=0
    _
  %s10 = ssub.s32 1, %s8
  %s11 = scalar_select 0, %s10, %s8
  $region1: #{tpu_custom_call.1} parent=0
    #allocation2 [shape = 'u8[8192]{0}', space=vmem, size = 0x2000, scoped, tag = 'output window, operand 0']
    #allocation3 [shape = 's32[2]{0}', space=sflag, size = 0x8, scoped, tag = 'scoped memory for tpu_custom_call.1']
    %12 = vsyncpa [#allocation3], 0
    %s13 = scalar_lea.sflag [#allocation3], 1
    %14 = vsyncpa %s13, 0
    loop: start=0, step=1, limit=4
    $region2: #{tpu_custom_call.1} parent=1 // loop_pre_header
      _
    $region3: #{tpu_custom_call.1} parent=1 // loop_header
      %s16 = sphi 0, %s20
      %p17 = scmp.ge.s32.totalorder %s16, 4
      %s26 = sphi 0, %s28
      %s29 = sphi 0, %s26
      %s30 = sphi 0, %s29
      %s46 = sphi 0, %s30
      %s50 = sphi 0, %s50
      %s52 = sphi 0, %s50
      %s53 = sphi 0, %s52
      %s67 = sphi 0, %s53
      %s71 = sphi 0, %s71
      %s73 = sphi 0, %s71
      %s74 = sphi 0, %s73
      %s88 = sphi 0, %s74
      %s92 = sphi 0, %s92
      %s94 = sphi 0, %s92
      %s95 = sphi 0, %s94
      %s109 = sphi 0, %s95
      %s113 = sphi 0, %s113
      %s115 = sphi 0, %s113
      %s116 = sphi 0, %s115
      %s130 = sphi 0, %s116
      %s134 = sphi 0, %s134
      %s136 = sphi 0, %s134
      %s137 = sphi 0, %s136
      %s151 = sphi 0, %s137
      %s155 = sphi 0, %s155
      %s157 = sphi 0, %s155
      %s158 = sphi 0, %s157
      %s172 = sphi 0, %s158
      %s178 = sphi 0, %s180
      %s181 = sphi 0, %s178
      %s182 = sphi 0, %s181
      %s198 = sphi 0, %s182
    $region4: #{tpu_custom_call.1} parent=1 // loop_header_branch
      %19 = sbr.rel (%p17) target = $region8
    $region5: #{tpu_custom_call.1} parent=1 // loop_body
      %s21 = ssub.s32 %s16, 1
      %s22 = ssub.s32 %s16, 2
      %s23 = sadd.s32 %s16, 1
      %s24 = ssub.s32 %s16, %s23
      %p25 = scmp.eq.s32.totalorder %s24, 0
      %s27 = sadd.s32 %s26, 1
      %s28 = scalar_select %p25, %s26, %s27
      %p31 = pneg %p25
      %p32 = scmp.eq.s32.totalorder %s16, 1
      %p33 = por %p31, %p32
      %p34 = scmp.ne.s32.totalorder %s26, %s29
      %p35 = scmp.eq.s32.totalorder %s16, 0
      %p36 = por %p34, %p35
      %p37 = scmp.ne.s32.totalorder %s26, %s29
      %p38 = scmp.eq.s32.totalorder %s21, 1
      %p39 = por %p37, %p38
      %p40 = scmp.ne.s32.totalorder %s29, %s30
      %p41 = scmp.eq.s32.totalorder %s21, 0
      %p42 = por %p40, %p41
      %p43 = scmp.ne.s32.totalorder %s29, %s30
      %p44 = scmp.eq.s32.totalorder %s22, 1
      %p45 = por %p43, %p44
      %p47 = scmp.ne.s32.totalorder %s30, %s46
      %p48 = scmp.eq.s32.totalorder %s22, 0
      %p49 = por %p47, %p48
      %s51 = sadd.s32 %s50, 1
      %p54 = scmp.eq.s32.totalorder %s16, 1
      %p55 = scmp.ne.s32.totalorder %s50, %s52
      %p56 = scmp.eq.s32.totalorder %s16, 0
      %p57 = por %p55, %p56
      %p58 = scmp.ne.s32.totalorder %s50, %s52
      %p59 = scmp.eq.s32.totalorder %s21, 1
      %p60 = por %p58, %p59
      %p61 = scmp.ne.s32.totalorder %s52, %s53
      %p62 = scmp.eq.s32.totalorder %s21, 0
      %p63 = por %p61, %p62
      %p64 = scmp.ne.s32.totalorder %s52, %s53
      %p65 = scmp.eq.s32.totalorder %s22, 1
      %p66 = por %p64, %p65
      %p68 = scmp.ne.s32.totalorder %s53, %s67
      %p69 = scmp.eq.s32.totalorder %s22, 0
      %p70 = por %p68, %p69
      %s72 = sadd.s32 %s71, 1
      %p75 = scmp.eq.s32.totalorder %s16, 1
      %p76 = scmp.ne.s32.totalorder %s71, %s73
      %p77 = scmp.eq.s32.totalorder %s16, 0
      %p78 = por %p76, %p77
      %p79 = scmp.ne.s32.totalorder %s71, %s73
      %p80 = scmp.eq.s32.totalorder %s21, 1
      %p81 = por %p79, %p80
      %p82 = scmp.ne.s32.totalorder %s73, %s74
      %p83 = scmp.eq.s32.totalorder %s21, 0
      %p84 = por %p82, %p83
      %p85 = scmp.ne.s32.totalorder %s73, %s74
      %p86 = scmp.eq.s32.totalorder %s22, 1
      %p87 = por %p85, %p86
      %p89 = scmp.ne.s32.totalorder %s74, %s88
      %p90 = scmp.eq.s32.totalorder %s22, 0
      %p91 = por %p89, %p90
      %s93 = sadd.s32 %s92, 1
      %p96 = scmp.eq.s32.totalorder %s16, 1
      %p97 = scmp.ne.s32.totalorder %s92, %s94
      %p98 = scmp.eq.s32.totalorder %s16, 0
      %p99 = por %p97, %p98
      %p100 = scmp.ne.s32.totalorder %s92, %s94
      %p101 = scmp.eq.s32.totalorder %s21, 1
      %p102 = por %p100, %p101
      %p103 = scmp.ne.s32.totalorder %s94, %s95
      %p104 = scmp.eq.s32.totalorder %s21, 0
      %p105 = por %p103, %p104
      %p106 = scmp.ne.s32.totalorder %s94, %s95
      %p107 = scmp.eq.s32.totalorder %s22, 1
      %p108 = por %p106, %p107
      %p110 = scmp.ne.s32.totalorder %s95, %s109
      %p111 = scmp.eq.s32.totalorder %s22, 0
      %p112 = por %p110, %p111
      %s114 = sadd.s32 %s113, 1
      %p117 = scmp.eq.s32.totalorder %s16, 1
      %p118 = scmp.ne.s32.totalorder %s113, %s115
      %p119 = scmp.eq.s32.totalorder %s16, 0
      %p120 = por %p118, %p119
      %p121 = scmp.ne.s32.totalorder %s113, %s115
      %p122 = scmp.eq.s32.totalorder %s21, 1
      %p123 = por %p121, %p122
      %p124 = scmp.ne.s32.totalorder %s115, %s116
      %p125 = scmp.eq.s32.totalorder %s21, 0
      %p126 = por %p124, %p125
      %p127 = scmp.ne.s32.totalorder %s115, %s116
      %p128 = scmp.eq.s32.totalorder %s22, 1
      %p129 = por %p127, %p128
      %p131 = scmp.ne.s32.totalorder %s116, %s130
      %p132 = scmp.eq.s32.totalorder %s22, 0
      %p133 = por %p131, %p132
      %s135 = sadd.s32 %s134, 1
      %p138 = scmp.eq.s32.totalorder %s16, 1
      %p139 = scmp.ne.s32.totalorder %s134, %s136
      %p140 = scmp.eq.s32.totalorder %s16, 0
      %p141 = por %p139, %p140
      %p142 = scmp.ne.s32.totalorder %s134, %s136
      %p143 = scmp.eq.s32.totalorder %s21, 1
      %p144 = por %p142, %p143
      %p145 = scmp.ne.s32.totalorder %s136, %s137
      %p146 = scmp.eq.s32.totalorder %s21, 0
      %p147 = por %p145, %p146
      %p148 = scmp.ne.s32.totalorder %s136, %s137
      %p149 = scmp.eq.s32.totalorder %s22, 1
      %p150 = por %p148, %p149
      %p152 = scmp.ne.s32.totalorder %s137, %s151
      %p153 = scmp.eq.s32.totalorder %s22, 0
      %p154 = por %p152, %p153
      %s156 = sadd.s32 %s155, 1
      %p159 = scmp.eq.s32.totalorder %s16, 1
      %p160 = scmp.ne.s32.totalorder %s155, %s157
      %p161 = scmp.eq.s32.totalorder %s16, 0
      %p162 = por %p160, %p161
      %p163 = scmp.ne.s32.totalorder %s155, %s157
      %p164 = scmp.eq.s32.totalorder %s21, 1
      %p165 = por %p163, %p164
      %p166 = scmp.ne.s32.totalorder %s157, %s158
      %p167 = scmp.eq.s32.totalorder %s21, 0
      %p168 = por %p166, %p167
      %p169 = scmp.ne.s32.totalorder %s157, %s158
      %p170 = scmp.eq.s32.totalorder %s22, 1
      %p171 = por %p169, %p170
      %p173 = scmp.ne.s32.totalorder %s158, %s172
      %p174 = scmp.eq.s32.totalorder %s22, 0
      %p175 = por %p173, %p174
      %s176 = ssub.s32 %s16, %s23
      %p177 = scmp.eq.s32.totalorder %s176, 0
      %s179 = sadd.s32 %s178, 1
      %s180 = scalar_select %p177, %s178, %s179
      %p183 = pneg %p177
      %p184 = scmp.eq.s32.totalorder %s16, 1
      %p185 = por %p183, %p184
      %p186 = scmp.ne.s32.totalorder %s178, %s181
      %p187 = scmp.eq.s32.totalorder %s16, 0
      %p188 = por %p186, %p187
      %p189 = scmp.ne.s32.totalorder %s178, %s181
      %p190 = scmp.eq.s32.totalorder %s21, 1
      %p191 = por %p189, %p190
      %p192 = scmp.ne.s32.totalorder %s181, %s182
      %p193 = scmp.eq.s32.totalorder %s21, 0
      %p194 = por %p192, %p193
      %p195 = scmp.ne.s32.totalorder %s181, %s182
      %p196 = scmp.eq.s32.totalorder %s22, 1
      %p197 = por %p195, %p196
      %p199 = scmp.ne.s32.totalorder %s182, %s198
      %p200 = scmp.eq.s32.totalorder %s22, 0
      %p201 = por %p199, %p200
      %p202 = scmp.le.s32.totalorder 1, %s16
      %p203 = scmp.lt.s32.totalorder %s16, 3
      %p204 = pnand %p202, %p203
      %p205 = pneg %p204
      // Predicated region
      $region9: #{tpu_custom_call.1} parent=5 // pred_check
        _
      $region10: #{tpu_custom_call.1} parent=5 // pred_check_branch
        %207 = sbr.rel (%p204) target = $region12
      $region11: #{tpu_custom_call.1} parent=5 // pred_region
        %s208 = ssub.s32 %s16, 1
        // Predicated region
        $region13: #{tpu_custom_call.1} parent=11 // pred_check
          %p209 = pneg %p63
        $region14: #{tpu_custom_call.1} parent=11 // pred_check_branch
          %211 = sbr.rel (%p209) target = $region16
        $region15: #{tpu_custom_call.1} parent=11 // pred_region
          _
        $region16: #{tpu_custom_call.1} parent=11 // pred_fallthru
          _
        // Predicated region
        $region17: #{tpu_custom_call.1} parent=11 // pred_check
          %p212 = pneg %p84
        $region18: #{tpu_custom_call.1} parent=11 // pred_check_branch
          %214 = sbr.rel (%p212) target = $region20
        $region19: #{tpu_custom_call.1} parent=11 // pred_region
          _
        $region20: #{tpu_custom_call.1} parent=11 // pred_fallthru
          _
        // Predicated region
        $region21: #{tpu_custom_call.1} parent=11 // pred_check
          %p215 = pneg %p105
        $region22: #{tpu_custom_call.1} parent=11 // pred_check_branch
          %217 = sbr.rel (%p215) target = $region24
        $region23: #{tpu_custom_call.1} parent=11 // pred_region
          _
        $region24: #{tpu_custom_call.1} parent=11 // pred_fallthru
          _
        // Predicated region
        $region25: #{tpu_custom_call.1} parent=11 // pred_check
          %p218 = pneg %p126
        $region26: #{tpu_custom_call.1} parent=11 // pred_check_branch
          %220 = sbr.rel (%p218) target = $region28
        $region27: #{tpu_custom_call.1} parent=11 // pred_region
          _
        $region28: #{tpu_custom_call.1} parent=11 // pred_fallthru
          _
        // Predicated region
        $region29: #{tpu_custom_call.1} parent=11 // pred_check
          %p221 = pneg %p147
        $region30: #{tpu_custom_call.1} parent=11 // pred_check_branch
          %223 = sbr.rel (%p221) target = $region32
        $region31: #{tpu_custom_call.1} parent=11 // pred_region
          _
        $region32: #{tpu_custom_call.1} parent=11 // pred_fallthru
          _
        // Predicated region
        $region33: #{tpu_custom_call.1} parent=11 // pred_check
          %p224 = pneg %p168
        $region34: #{tpu_custom_call.1} parent=11 // pred_check_branch
          %226 = sbr.rel (%p224) target = $region36
        $region35: #{tpu_custom_call.1} parent=11 // pred_region
          _
        $region36: #{tpu_custom_call.1} parent=11 // pred_fallthru
          _
      $region12: #{tpu_custom_call.1} parent=5 // pred_fallthru
        _
      %p227 = scmp.lt.s32.totalorder %s16, 2
      // Predicated region
      $region37: #{tpu_custom_call.1} parent=5 // pred_check
        %p228 = pneg %p227
      $region38: #{tpu_custom_call.1} parent=5 // pred_check_branch
        %230 = sbr.rel (%p228) target = $region40
      $region39: #{tpu_custom_call.1} parent=5 // pred_region
        // Predicated region
        $region41: #{tpu_custom_call.1} parent=39 // pred_check
          %p231 = pneg %p36
        $region42: #{tpu_custom_call.1} parent=39 // pred_check_branch
          %233 = sbr.rel (%p231) target = $region44
        $region43: #{tpu_custom_call.1} parent=39 // pred_region
          %s234 = smul.u32 2, %s16
          %p235 = scmp.lt.s32.totalorder %s234, 3
          %s236 = scalar_select %p235, %s234, 3
          %s237 = smul.addr %s236, 2
          %s238 = scalar_lea.vmem %s0, %s237
          %s239 = smul.u32 2, %s16
        $region44: #{tpu_custom_call.1} parent=39 // pred_fallthru
          _
      $region40: #{tpu_custom_call.1} parent=5 // pred_fallthru
        _
      %p240 = scmp.le.s32.totalorder 1, %s16
      %p241 = scmp.lt.s32.totalorder %s16, 3
      %p242 = pnand %p240, %p241
      %p243 = pneg %p242
      // Predicated region
      $region45: #{tpu_custom_call.1} parent=5 // pred_check
        _
      $region46: #{tpu_custom_call.1} parent=5 // pred_check_branch
        %245 = sbr.rel (%p242) target = $region48
      $region47: #{tpu_custom_call.1} parent=5 // pred_region
        %s246 = ssub.s32 %s16, 1
        %s247 = smul.u32 2, %s21
        %p248 = scmp.lt.s32.totalorder %s247, 3
        %s249 = scalar_select %p248, %s247, 3
        %s250 = smul.addr %s249, 2
        %s251 = scalar_lea.vmem %s0, %s250
        %p252 = pneg %p42
        %p253 = pneg %p39
        %p254 = pneg %p63
        %p255 = pneg %p60
        %p256 = pneg %p84
        %p257 = pneg %p81
        %p258 = pneg %p105
        %p259 = pneg %p102
        %p260 = pneg %p126
        %p261 = pneg %p123
        %p262 = pneg %p147
        %p263 = pneg %p144
        %p264 = pneg %p168
        %p265 = pneg %p165
        %p266 = pneg %p194
        %p267 = pneg %p191
        %s268 = sand.u32 %s181, 1
        %s269 = scalar_lea.sflag [#allocation3], %s268
        %s270 = sand.u32 %s181, 1
        %s271 = smul.addr %s270, 8
        %s272 = scalar_lea.vmem [#allocation2], %s271
        %s273 = smul.u32 2, %s21
        %p274 = scmp.lt.s32.totalorder %s273, 3
        %s275 = scalar_select %p274, %s273, 3
        %s276 = smul.addr %s275, 2
        %s277 = scalar_lea.vmem %s0, %s276
        %s278 = smul.u32 2, %s21
        %s279 = smul.u32 2, %s21
        %v280 = vld [vmem:[%s277] sm:$0xf]
        %v281 = vld [vmem:[%s1] sm:$0xff]
        %v282 = vld [vmem:[%s1 + $0x8] sm:$0xff]
        %v283 = vld [vmem:[%s1 + $0x10] sm:$0xff]
        %v284 = vld [vmem:[%s1 + $0x18] sm:$0xff]
        %286 = vset.pattern.permute.xlu0 0
        %287 = vperm.xlu0 %286, %v281
        %v288 = vpop.permute.xlu0 %287
        %291 = vset.pattern.permute.xlu0 0
        %292 = vperm.xlu0 %291, %v282
        %v293 = vpop.permute.xlu0 %292
        %296 = vset.pattern.permute.xlu0 0
        %297 = vperm.xlu0 %296, %v283
        %v298 = vpop.permute.xlu0 %297
        %301 = vset.pattern.permute.xlu0 0
        %302 = vperm.xlu0 %301, %v284
        %v303 = vpop.permute.xlu0 %302
        %v306 = vlaneseq
        %v307 = vshrl.u32 %v306, 7
        %v308 = vsub.s32 0, %v307
        %v309 = vrot.slane %v280, %v308
        %v310 = vlaneseq
        %v311 = vshrl.u32 %v310, 7
        %v312 = vsub.s32 2, %v311
        %v313 = vrot.slane %v280, %v312
        %v316 = vlaneseq
        %v317 = vshrl.u32 %v316, 7
        %v318 = vsub.s32 0, %v317
        %v319 = vrot.slane %v309, %v318
        %v320 = vlaneseq
        %v321 = vshrl.u32 %v320, 7
        %v322 = vsub.s32 0, %v321
        %v323 = vrot.slane %v313, %v322
        %v324 = vmul.f32 %v288, %v319
        %v325 = vmul.f32 %v288, %v323
        %v326 = vmul.f32 %v293, %v319
        %v327 = vmul.f32 %v293, %v323
        %v328 = vmul.f32 %v298, %v319
        %v329 = vmul.f32 %v298, %v323
        %v330 = vmul.f32 %v303, %v319
        %v331 = vmul.f32 %v303, %v323
        %332 = vset.pattern.permute.xlu0 1
        %333 = vperm.xlu0 %332, %v281
        %v334 = vpop.permute.xlu0 %333
        %336 = vset.pattern.permute.xlu0 1
        %337 = vperm.xlu0 %336, %v282
        %v338 = vpop.permute.xlu0 %337
        %340 = vset.pattern.permute.xlu0 1
        %341 = vperm.xlu0 %340, %v283
        %v342 = vpop.permute.xlu0 %341
        %344 = vset.pattern.permute.xlu0 1
        %345 = vperm.xlu0 %344, %v284
        %v346 = vpop.permute.xlu0 %345
        %v348 = vlaneseq
        %v349 = vshrl.u32 %v348, 7
        %v350 = vsub.s32 1, %v349
        %v351 = vrot.slane %v280, %v350
        %v352 = vlaneseq
        %v353 = vshrl.u32 %v352, 7
        %v354 = vsub.s32 3, %v353
        %v355 = vrot.slane %v280, %v354
        %v358 = vlaneseq
        %v359 = vshrl.u32 %v358, 7
        %v360 = vsub.s32 1, %v359
        %v361 = vrot.slane %v351, %v360
        %v362 = vlaneseq
        %v363 = vshrl.u32 %v362, 7
        %v364 = vsub.s32 1, %v363
        %v365 = vrot.slane %v355, %v364
        %v366 = vmul.f32 %v334, %v361
        %v367 = vmul.f32 %v334, %v365
        %v368 = vmul.f32 %v338, %v361
        %v369 = vmul.f32 %v338, %v365
        %v370 = vmul.f32 %v342, %v361
        %v371 = vmul.f32 %v342, %v365
        %v372 = vmul.f32 %v346, %v361
        %v373 = vmul.f32 %v346, %v365
        %v374 = vadd.f32 %v324, %v366
        %v375 = vadd.f32 %v325, %v367
        %v376 = vadd.f32 %v326, %v368
        %v377 = vadd.f32 %v327, %v369
        %v378 = vadd.f32 %v328, %v370
        %v379 = vadd.f32 %v329, %v371
        %v380 = vadd.f32 %v330, %v372
        %v381 = vadd.f32 %v331, %v373
        %v382 = vld [vmem:[%s2] sm:$0xff]
        %v383 = vld [vmem:[%s2 + $0x8] sm:$0xff]
        %v384 = vld [vmem:[%s2 + $0x10] sm:$0xff]
        %v385 = vld [vmem:[%s2 + $0x18] sm:$0xff]
        %387 = vset.pattern.permute.xlu0 0
        %388 = vperm.xlu0 %387, %v382
        %v389 = vpop.permute.xlu0 %388
        %392 = vset.pattern.permute.xlu0 0
        %393 = vperm.xlu0 %392, %v383
        %v394 = vpop.permute.xlu0 %393
        %397 = vset.pattern.permute.xlu0 0
        %398 = vperm.xlu0 %397, %v384
        %v399 = vpop.permute.xlu0 %398
        %402 = vset.pattern.permute.xlu0 0
        %403 = vperm.xlu0 %402, %v385
        %v404 = vpop.permute.xlu0 %403
        %v406 = vadd.f32 %v374, %v389
        %v407 = vadd.f32 %v375, %v389
        %v408 = vadd.f32 %v376, %v394
        %v409 = vadd.f32 %v377, %v394
        %v410 = vadd.f32 %v378, %v399
        %v411 = vadd.f32 %v379, %v399
        %v412 = vadd.f32 %v380, %v404
        %v413 = vadd.f32 %v381, %v404
        %v414 = vand.u32 2147483647, %v406
        %vm415 = vcmp.le.f32.partialorder %v414, 0.7853982
        %vm416 = vcmp.lt.s32.totalorder %v406, 0
        %v417 = vand.u32 %v406, 2139095040
        %v418 = vshrl.u32 %v417, 23
        %v419 = vsub.s32 %v418, 127
        %v420 = vand.u32 2147483647, %v406
        %v421 = vand.u32 %v420, 8388607
        %v422 = vor.u32 %v421, 8388608
        %v423 = vsub.s32 0, %v422
        %v424 = vadd.s32 %v419, 1
        %vm425 = vcmp.gt.s32.totalorder %v424, 0
        %v426 = vsel %vm425, %v424, 0
        %v427 = vshrl.u32 %v426, 5
        %v428 = vand.u32 %v426, 31
        %v429 = vsub.s32 32, %v428
        %v430 = vshrl.u32 683565275, %v429
        %v431 = vshll.u32 683565275, %v428
        %v432 = vshrl.u32 2475754826, %v429
        %v433 = vor.u32 %v431, %v432
        %v434 = vshll.u32 2475754826, %v428
        %v435 = vshrl.u32 2131351028, %v429
        %v436 = vor.u32 %v434, %v435
        %v437 = vshll.u32 2131351028, %v428
        %v438 = vshrl.u32 2102212464, %v429
        %v439 = vor.u32 %v437, %v438
        %v440 = vshll.u32 2102212464, %v428
        %v441 = vshrl.u32 920167782, %v429
        %v442 = vor.u32 %v440, %v441
        %v443 = vshll.u32 920167782, %v428
        %v444 = vshrl.u32 1326507024, %v429
        %v445 = vor.u32 %v443, %v444
        %vm446 = vcmp.lt.s32.totalorder %v427, 1
        %vm447 = vcmp.lt.s32.totalorder %v427, 2
        %vm448 = vcmp.lt.s32.totalorder %v427, 3
        %vm449 = vcmp.lt.s32.totalorder %v427, 4
        %v450 = vsel %vm446, %v430, %v433
        %v451 = vsel %vm449, %v439, 2102212464
        %v452 = vsel %vm448, %v436, %v451
        %v453 = vsel %vm447, %v450, %v452
        %v454 = vsel %vm446, %v433, %v436
        %v455 = vsel %vm449, %v442, 920167782
        %v456 = vsel %vm448, %v439, %v455
        %v457 = vsel %vm447, %v454, %v456
        %v458 = vsel %vm446, %v436, %v439
        %v459 = vsel %vm449, %v445, 1326507024
        %v460 = vsel %vm448, %v442, %v459
        %v461 = vsel %vm447, %v458, %v460
        %v462 = vshll.u32 %v422, 8
        %v463 = vmul.u32.u64.compose %v462, %v461
        %v464 = vextract.low.u32 %v463
        %v465 = vextract.high.u32 %v463
        %v466 = vmul.u32.u64.compose %v462, %v457
        %v467 = vextract.low.u32 %v466
        %v468 = vextract.high.u32 %v466
        %v469 = vmul.u32 %v462, %v453
        %v470 = vadd.s32 %v465, %v467
        %vm471 = vc.u32 %v465, %v467
        %v472 = vadd.s32 %v468, 1
        %v473 = vsel %vm471, %v472, %v468
        %v474 = vadd.s32 %v469, %v473
        %v475 = vadd.s32 %v474, 536870912
        %v476 = vshrl.u32 %v475, 30
        %v477 = vshll.u32 %v476, 30
        %v478 = vsub.s32 %v474, %v477
        %vm479 = vcmp.lt.s32.totalorder %v478, 0
        %v480 = vsub.s32 0, %v478
        %v481 = vsel %vm479, %v480, %v478
        %v482 = vclz %v481
        %v483 = vsub.s32 %v482, 2
        %vm484 = vcmp.gt.s32.totalorder 0, %v483
        %v485 = vsel %vm484, 0, %v483
        %v486 = vsub.s32 32, %v485
        %v487 = vshll.u32 %v478, %v485
        %v488 = vshrl.u32 %v470, %v486
        %v489 = vor.u32 %v487, %v488
        %v490 = vsub.s32 4294967266, %v485
        %v491 = vadd.s32 %v490, 127
        %v492 = vshll.u32 %v491, 23
        %v493 = vor.u32 4788187, %v492
        %v494 = vand.u32 2147483647, %v493
        %v496 = vcvt.s32.f32 %v489
        %v497 = vmul.f32 %v496, %v494
        %v498 = vxor.u32 %v497, 2147483648
        %v499 = vsel %vm416, %v498, %v497
        %v500 = vsub.s32 4, %v476
        %v501 = vsel %vm416, %v500, %v476
        %v502 = vsel %vm415, %v406, %v499
        %v503 = vsel %vm415, 0, %v501
        %v504 = vcosq.f32.pop %v502
        %v505 = vsinq.f32.pop %v502
        %vm506 = vweird.f32 %v406
        %v507 = vadd.s32 %v503, 3
        %v508 = vand.u32 %v507, 3
        %vm509 = vcmp.lt.s32.totalorder %v508, 2
        %vm510 = vcmp.eq.s32.totalorder %v508, 0
        %v511 = vxor.u32 %v505, 2147483648
        %v512 = vsel %vm510, %v504, %v511
        %vm513 = vcmp.eq.s32.totalorder %v508, 2
        %v514 = vxor.u32 %v504, 2147483648
        %v515 = vsel %vm513, %v514, %v505
        %v516 = vsel %vm509, %v512, %v515
        %v517 = vsel %vm506, nan, %v516
        %v518 = vand.u32 2147483647, %v407
        %vm519 = vcmp.le.f32.partialorder %v518, 0.7853982
        %vm520 = vcmp.lt.s32.totalorder %v407, 0
        %v521 = vand.u32 %v407, 2139095040
        %v522 = vshrl.u32 %v521, 23
        %v523 = vsub.s32 %v522, 127
        %v524 = vand.u32 2147483647, %v407
        %v525 = vand.u32 %v524, 8388607
        %v526 = vor.u32 %v525, 8388608
        %v527 = vsub.s32 0, %v526
        %v528 = vadd.s32 %v523, 1
        %vm529 = vcmp.gt.s32.totalorder %v528, 0
        %v530 = vsel %vm529, %v528, 0
        %v531 = vshrl.u32 %v530, 5
        %v532 = vand.u32 %v530, 31
        %v533 = vsub.s32 32, %v532
        %v534 = vshrl.u32 683565275, %v533
        %v535 = vshll.u32 683565275, %v532
        %v536 = vshrl.u32 2475754826, %v533
        %v537 = vor.u32 %v535, %v536
        %v538 = vshll.u32 2475754826, %v532
        %v539 = vshrl.u32 2131351028, %v533
        %v540 = vor.u32 %v538, %v539
        %v541 = vshll.u32 2131351028, %v532
        %v542 = vshrl.u32 2102212464, %v533
        %v543 = vor.u32 %v541, %v542
        %v544 = vshll.u32 2102212464, %v532
        %v545 = vshrl.u32 920167782, %v533
        %v546 = vor.u32 %v544, %v545
        %v547 = vshll.u32 920167782, %v532
        %v548 = vshrl.u32 1326507024, %v533
        %v549 = vor.u32 %v547, %v548
        %vm550 = vcmp.lt.s32.totalorder %v531, 1
        %vm551 = vcmp.lt.s32.totalorder %v531, 2
        %vm552 = vcmp.lt.s32.totalorder %v531, 3
        %vm553 = vcmp.lt.s32.totalorder %v531, 4
        %v554 = vsel %vm550, %v534, %v537
        %v555 = vsel %vm553, %v543, 2102212464
        %v556 = vsel %vm552, %v540, %v555
        %v557 = vsel %vm551, %v554, %v556
        %v558 = vsel %vm550, %v537, %v540
        %v559 = vsel %vm553, %v546, 920167782
        %v560 = vsel %vm552, %v543, %v559
        %v561 = vsel %vm551, %v558, %v560
        %v562 = vsel %vm550, %v540, %v543
        %v563 = vsel %vm553, %v549, 1326507024
        %v564 = vsel %vm552, %v546, %v563
        %v565 = vsel %vm551, %v562, %v564
        %v566 = vshll.u32 %v526, 8
        %v567 = vmul.u32.u64.compose %v566, %v565
        %v568 = vextract.low.u32 %v567
        %v569 = vextract.high.u32 %v567
        %v570 = vmul.u32.u64.compose %v566, %v561
        %v571 = vextract.low.u32 %v570
        %v572 = vextract.high.u32 %v570
        %v573 = vmul.u32 %v566, %v557
        %v574 = vadd.s32 %v569, %v571
        %vm575 = vc.u32 %v569, %v571
        %v576 = vadd.s32 %v572, 1
        %v577 = vsel %vm575, %v576, %v572
        %v578 = vadd.s32 %v573, %v577
        %v579 = vadd.s32 %v578, 536870912
        %v580 = vshrl.u32 %v579, 30
        %v581 = vshll.u32 %v580, 30
        %v582 = vsub.s32 %v578, %v581
        %vm583 = vcmp.lt.s32.totalorder %v582, 0
        %v584 = vsub.s32 0, %v582
        %v585 = vsel %vm583, %v584, %v582
        %v586 = vclz %v585
        %v587 = vsub.s32 %v586, 2
        %vm588 = vcmp.gt.s32.totalorder 0, %v587
        %v589 = vsel %vm588, 0, %v587
        %v590 = vsub.s32 32, %v589
        %v591 = vshll.u32 %v582, %v589
        %v592 = vshrl.u32 %v574, %v590
        %v593 = vor.u32 %v591, %v592
        %v594 = vsub.s32 4294967266, %v589
        %v595 = vadd.s32 %v594, 127
        %v596 = vshll.u32 %v595, 23
        %v597 = vor.u32 4788187, %v596
        %v598 = vand.u32 2147483647, %v597
        %v600 = vcvt.s32.f32 %v593
        %v601 = vmul.f32 %v600, %v598
        %v602 = vxor.u32 %v601, 2147483648
        %v603 = vsel %vm520, %v602, %v601
        %v604 = vsub.s32 4, %v580
        %v605 = vsel %vm520, %v604, %v580
        %v606 = vsel %vm519, %v407, %v603
        %v607 = vsel %vm519, 0, %v605
        %v608 = vcosq.f32.pop %v606
        %v609 = vsinq.f32.pop %v606
        %vm610 = vweird.f32 %v407
        %v611 = vadd.s32 %v607, 3
        %v612 = vand.u32 %v611, 3
        %vm613 = vcmp.lt.s32.totalorder %v612, 2
        %vm614 = vcmp.eq.s32.totalorder %v612, 0
        %v615 = vxor.u32 %v609, 2147483648
        %v616 = vsel %vm614, %v608, %v615
        %vm617 = vcmp.eq.s32.totalorder %v612, 2
        %v618 = vxor.u32 %v608, 2147483648
        %v619 = vsel %vm617, %v618, %v609
        %v620 = vsel %vm613, %v616, %v619
        %v621 = vsel %vm610, nan, %v620
        %v622 = vand.u32 2147483647, %v408
        %vm623 = vcmp.le.f32.partialorder %v622, 0.7853982
        %vm624 = vcmp.lt.s32.totalorder %v408, 0
        %v625 = vand.u32 %v408, 2139095040
        %v626 = vshrl.u32 %v625, 23
        %v627 = vsub.s32 %v626, 127
        %v628 = vand.u32 2147483647, %v408
        %v629 = vand.u32 %v628, 8388607
        %v630 = vor.u32 %v629, 8388608
        %v631 = vsub.s32 0, %v630
        %v632 = vadd.s32 %v627, 1
        %vm633 = vcmp.gt.s32.totalorder %v632, 0
        %v634 = vsel %vm633, %v632, 0
        %v635 = vshrl.u32 %v634, 5
        %v636 = vand.u32 %v634, 31
        %v637 = vsub.s32 32, %v636
        %v638 = vshrl.u32 683565275, %v637
        %v639 = vshll.u32 683565275, %v636
        %v640 = vshrl.u32 2475754826, %v637
        %v641 = vor.u32 %v639, %v640
        %v642 = vshll.u32 2475754826, %v636
        %v643 = vshrl.u32 2131351028, %v637
        %v644 = vor.u32 %v642, %v643
        %v645 = vshll.u32 2131351028, %v636
        %v646 = vshrl.u32 2102212464, %v637
        %v647 = vor.u32 %v645, %v646
        %v648 = vshll.u32 2102212464, %v636
        %v649 = vshrl.u32 920167782, %v637
        %v650 = vor.u32 %v648, %v649
        %v651 = vshll.u32 920167782, %v636
        %v652 = vshrl.u32 1326507024, %v637
        %v653 = vor.u32 %v651, %v652
        %vm654 = vcmp.lt.s32.totalorder %v635, 1
        %vm655 = vcmp.lt.s32.totalorder %v635, 2
        %vm656 = vcmp.lt.s32.totalorder %v635, 3
        %vm657 = vcmp.lt.s32.totalorder %v635, 4
        %v658 = vsel %vm654, %v638, %v641
        %v659 = vsel %vm657, %v647, 2102212464
        %v660 = vsel %vm656, %v644, %v659
        %v661 = vsel %vm655, %v658, %v660
        %v662 = vsel %vm654, %v641, %v644
        %v663 = vsel %vm657, %v650, 920167782
        %v664 = vsel %vm656, %v647, %v663
        %v665 = vsel %vm655, %v662, %v664
        %v666 = vsel %vm654, %v644, %v647
        %v667 = vsel %vm657, %v653, 1326507024
        %v668 = vsel %vm656, %v650, %v667
        %v669 = vsel %vm655, %v666, %v668
        %v670 = vshll.u32 %v630, 8
        %v671 = vmul.u32.u64.compose %v670, %v669
        %v672 = vextract.low.u32 %v671
        %v673 = vextract.high.u32 %v671
        %v674 = vmul.u32.u64.compose %v670, %v665
        %v675 = vextract.low.u32 %v674
        %v676 = vextract.high.u32 %v674
        %v677 = vmul.u32 %v670, %v661
        %v678 = vadd.s32 %v673, %v675
        %vm679 = vc.u32 %v673, %v675
        %v680 = vadd.s32 %v676, 1
        %v681 = vsel %vm679, %v680, %v676
        %v682 = vadd.s32 %v677, %v681
        %v683 = vadd.s32 %v682, 536870912
        %v684 = vshrl.u32 %v683, 30
        %v685 = vshll.u32 %v684, 30
        %v686 = vsub.s32 %v682, %v685
        %vm687 = vcmp.lt.s32.totalorder %v686, 0
        %v688 = vsub.s32 0, %v686
        %v689 = vsel %vm687, %v688, %v686
        %v690 = vclz %v689
        %v691 = vsub.s32 %v690, 2
        %vm692 = vcmp.gt.s32.totalorder 0, %v691
        %v693 = vsel %vm692, 0, %v691
        %v694 = vsub.s32 32, %v693
        %v695 = vshll.u32 %v686, %v693
        %v696 = vshrl.u32 %v678, %v694
        %v697 = vor.u32 %v695, %v696
        %v698 = vsub.s32 4294967266, %v693
        %v699 = vadd.s32 %v698, 127
        %v700 = vshll.u32 %v699, 23
        %v701 = vor.u32 4788187, %v700
        %v702 = vand.u32 2147483647, %v701
        %v704 = vcvt.s32.f32 %v697
        %v705 = vmul.f32 %v704, %v702
        %v706 = vxor.u32 %v705, 2147483648
        %v707 = vsel %vm624, %v706, %v705
        %v708 = vsub.s32 4, %v684
        %v709 = vsel %vm624, %v708, %v684
        %v710 = vsel %vm623, %v408, %v707
        %v711 = vsel %vm623, 0, %v709
        %v712 = vcosq.f32.pop %v710
        %v713 = vsinq.f32.pop %v710
        %vm714 = vweird.f32 %v408
        %v715 = vadd.s32 %v711, 3
        %v716 = vand.u32 %v715, 3
        %vm717 = vcmp.lt.s32.totalorder %v716, 2
        %vm718 = vcmp.eq.s32.totalorder %v716, 0
        %v719 = vxor.u32 %v713, 2147483648
        %v720 = vsel %vm718, %v712, %v719
        %vm721 = vcmp.eq.s32.totalorder %v716, 2
        %v722 = vxor.u32 %v712, 2147483648
        %v723 = vsel %vm721, %v722, %v713
        %v724 = vsel %vm717, %v720, %v723
        %v725 = vsel %vm714, nan, %v724
        %v726 = vand.u32 2147483647, %v409
        %vm727 = vcmp.le.f32.partialorder %v726, 0.7853982
        %vm728 = vcmp.lt.s32.totalorder %v409, 0
        %v729 = vand.u32 %v409, 2139095040
        %v730 = vshrl.u32 %v729, 23
        %v731 = vsub.s32 %v730, 127
        %v732 = vand.u32 2147483647, %v409
        %v733 = vand.u32 %v732, 8388607
        %v734 = vor.u32 %v733, 8388608
        %v735 = vsub.s32 0, %v734
        %v736 = vadd.s32 %v731, 1
        %vm737 = vcmp.gt.s32.totalorder %v736, 0
        %v738 = vsel %vm737, %v736, 0
        %v739 = vshrl.u32 %v738, 5
        %v740 = vand.u32 %v738, 31
        %v741 = vsub.s32 32, %v740
        %v742 = vshrl.u32 683565275, %v741
        %v743 = vshll.u32 683565275, %v740
        %v744 = vshrl.u32 2475754826, %v741
        %v745 = vor.u32 %v743, %v744
        %v746 = vshll.u32 2475754826, %v740
        %v747 = vshrl.u32 2131351028, %v741
        %v748 = vor.u32 %v746, %v747
        %v749 = vshll.u32 2131351028, %v740
        %v750 = vshrl.u32 2102212464, %v741
        %v751 = vor.u32 %v749, %v750
        %v752 = vshll.u32 2102212464, %v740
        %v753 = vshrl.u32 920167782, %v741
        %v754 = vor.u32 %v752, %v753
        %v755 = vshll.u32 920167782, %v740
        %v756 = vshrl.u32 1326507024, %v741
        %v757 = vor.u32 %v755, %v756
        %vm758 = vcmp.lt.s32.totalorder %v739, 1
        %vm759 = vcmp.lt.s32.totalorder %v739, 2
        %vm760 = vcmp.lt.s32.totalorder %v739, 3
        %vm761 = vcmp.lt.s32.totalorder %v739, 4
        %v762 = vsel %vm758, %v742, %v745
        %v763 = vsel %vm761, %v751, 2102212464
        %v764 = vsel %vm760, %v748, %v763
        %v765 = vsel %vm759, %v762, %v764
        %v766 = vsel %vm758, %v745, %v748
        %v767 = vsel %vm761, %v754, 920167782
        %v768 = vsel %vm760, %v751, %v767
        %v769 = vsel %vm759, %v766, %v768
        %v770 = vsel %vm758, %v748, %v751
        %v771 = vsel %vm761, %v757, 1326507024
        %v772 = vsel %vm760, %v754, %v771
        %v773 = vsel %vm759, %v770, %v772
        %v774 = vshll.u32 %v734, 8
        %v775 = vmul.u32.u64.compose %v774, %v773
        %v776 = vextract.low.u32 %v775
        %v777 = vextract.high.u32 %v775
        %v778 = vmul.u32.u64.compose %v774, %v769
        %v779 = vextract.low.u32 %v778
        %v780 = vextract.high.u32 %v778
        %v781 = vmul.u32 %v774, %v765
        %v782 = vadd.s32 %v777, %v779
        %vm783 = vc.u32 %v777, %v779
        %v784 = vadd.s32 %v780, 1
        %v785 = vsel %vm783, %v784, %v780
        %v786 = vadd.s32 %v781, %v785
        %v787 = vadd.s32 %v786, 536870912
        %v788 = vshrl.u32 %v787, 30
        %v789 = vshll.u32 %v788, 30
        %v790 = vsub.s32 %v786, %v789
        %vm791 = vcmp.lt.s32.totalorder %v790, 0
        %v792 = vsub.s32 0, %v790
        %v793 = vsel %vm791, %v792, %v790
        %v794 = vclz %v793
        %v795 = vsub.s32 %v794, 2
        %vm796 = vcmp.gt.s32.totalorder 0, %v795
        %v797 = vsel %vm796, 0, %v795
        %v798 = vsub.s32 32, %v797
        %v799 = vshll.u32 %v790, %v797
        %v800 = vshrl.u32 %v782, %v798
        %v801 = vor.u32 %v799, %v800
        %v802 = vsub.s32 4294967266, %v797
        %v803 = vadd.s32 %v802, 127
        %v804 = vshll.u32 %v803, 23
        %v805 = vor.u32 4788187, %v804
        %v806 = vand.u32 2147483647, %v805
        %v808 = vcvt.s32.f32 %v801
        %v809 = vmul.f32 %v808, %v806
        %v810 = vxor.u32 %v809, 2147483648
        %v811 = vsel %vm728, %v810, %v809
        %v812 = vsub.s32 4, %v788
        %v813 = vsel %vm728, %v812, %v788
        %v814 = vsel %vm727, %v409, %v811
        %v815 = vsel %vm727, 0, %v813
        %v816 = vcosq.f32.pop %v814
        %v817 = vsinq.f32.pop %v814
        %vm818 = vweird.f32 %v409
        %v819 = vadd.s32 %v815, 3
        %v820 = vand.u32 %v819, 3
        %vm821 = vcmp.lt.s32.totalorder %v820, 2
        %vm822 = vcmp.eq.s32.totalorder %v820, 0
        %v823 = vxor.u32 %v817, 2147483648
        %v824 = vsel %vm822, %v816, %v823
        %vm825 = vcmp.eq.s32.totalorder %v820, 2
        %v826 = vxor.u32 %v816, 2147483648
        %v827 = vsel %vm825, %v826, %v817
        %v828 = vsel %vm821, %v824, %v827
        %v829 = vsel %vm818, nan, %v828
        %v830 = vand.u32 2147483647, %v410
        %vm831 = vcmp.le.f32.partialorder %v830, 0.7853982
        %vm832 = vcmp.lt.s32.totalorder %v410, 0
        %v833 = vand.u32 %v410, 2139095040
        %v834 = vshrl.u32 %v833, 23
        %v835 = vsub.s32 %v834, 127
        %v836 = vand.u32 2147483647, %v410
        %v837 = vand.u32 %v836, 8388607
        %v838 = vor.u32 %v837, 8388608
        %v839 = vsub.s32 0, %v838
        %v840 = vadd.s32 %v835, 1
        %vm841 = vcmp.gt.s32.totalorder %v840, 0
        %v842 = vsel %vm841, %v840, 0
        %v843 = vshrl.u32 %v842, 5
        %v844 = vand.u32 %v842, 31
        %v845 = vsub.s32 32, %v844
        %v846 = vshrl.u32 683565275, %v845
        %v847 = vshll.u32 683565275, %v844
        %v848 = vshrl.u32 2475754826, %v845
        %v849 = vor.u32 %v847, %v848
        %v850 = vshll.u32 2475754826, %v844
        %v851 = vshrl.u32 2131351028, %v845
        %v852 = vor.u32 %v850, %v851
        %v853 = vshll.u32 2131351028, %v844
        %v854 = vshrl.u32 2102212464, %v845
        %v855 = vor.u32 %v853, %v854
        %v856 = vshll.u32 2102212464, %v844
        %v857 = vshrl.u32 920167782, %v845
        %v858 = vor.u32 %v856, %v857
        %v859 = vshll.u32 920167782, %v844
        %v860 = vshrl.u32 1326507024, %v845
        %v861 = vor.u32 %v859, %v860
        %vm862 = vcmp.lt.s32.totalorder %v843, 1
        %vm863 = vcmp.lt.s32.totalorder %v843, 2
        %vm864 = vcmp.lt.s32.totalorder %v843, 3
        %vm865 = vcmp.lt.s32.totalorder %v843, 4
        %v866 = vsel %vm862, %v846, %v849
        %v867 = vsel %vm865, %v855, 2102212464
        %v868 = vsel %vm864, %v852, %v867
        %v869 = vsel %vm863, %v866, %v868
        %v870 = vsel %vm862, %v849, %v852
        %v871 = vsel %vm865, %v858, 920167782
        %v872 = vsel %vm864, %v855, %v871
        %v873 = vsel %vm863, %v870, %v872
        %v874 = vsel %vm862, %v852, %v855
        %v875 = vsel %vm865, %v861, 1326507024
        %v876 = vsel %vm864, %v858, %v875
        %v877 = vsel %vm863, %v874, %v876
        %v878 = vshll.u32 %v838, 8
        %v879 = vmul.u32.u64.compose %v878, %v877
        %v880 = vextract.low.u32 %v879
        %v881 = vextract.high.u32 %v879
        %v882 = vmul.u32.u64.compose %v878, %v873
        %v883 = vextract.low.u32 %v882
        %v884 = vextract.high.u32 %v882
        %v885 = vmul.u32 %v878, %v869
        %v886 = vadd.s32 %v881, %v883
        %vm887 = vc.u32 %v881, %v883
        %v888 = vadd.s32 %v884, 1
        %v889 = vsel %vm887, %v888, %v884
        %v890 = vadd.s32 %v885, %v889
        %v891 = vadd.s32 %v890, 536870912
        %v892 = vshrl.u32 %v891, 30
        %v893 = vshll.u32 %v892, 30
        %v894 = vsub.s32 %v890, %v893
        %vm895 = vcmp.lt.s32.totalorder %v894, 0
        %v896 = vsub.s32 0, %v894
        %v897 = vsel %vm895, %v896, %v894
        %v898 = vclz %v897
        %v899 = vsub.s32 %v898, 2
        %vm900 = vcmp.gt.s32.totalorder 0, %v899
        %v901 = vsel %vm900, 0, %v899
        %v902 = vsub.s32 32, %v901
        %v903 = vshll.u32 %v894, %v901
        %v904 = vshrl.u32 %v886, %v902
        %v905 = vor.u32 %v903, %v904
        %v906 = vsub.s32 4294967266, %v901
        %v907 = vadd.s32 %v906, 127
        %v908 = vshll.u32 %v907, 23
        %v909 = vor.u32 4788187, %v908
        %v910 = vand.u32 2147483647, %v909
        %v912 = vcvt.s32.f32 %v905
        %v913 = vmul.f32 %v912, %v910
        %v914 = vxor.u32 %v913, 2147483648
        %v915 = vsel %vm832, %v914, %v913
        %v916 = vsub.s32 4, %v892
        %v917 = vsel %vm832, %v916, %v892
        %v918 = vsel %vm831, %v410, %v915
        %v919 = vsel %vm831, 0, %v917
        %v920 = vcosq.f32.pop %v918
        %v921 = vsinq.f32.pop %v918
        %vm922 = vweird.f32 %v410
        %v923 = vadd.s32 %v919, 3
        %v924 = vand.u32 %v923, 3
        %vm925 = vcmp.lt.s32.totalorder %v924, 2
        %vm926 = vcmp.eq.s32.totalorder %v924, 0
        %v927 = vxor.u32 %v921, 2147483648
        %v928 = vsel %vm926, %v920, %v927
        %vm929 = vcmp.eq.s32.totalorder %v924, 2
        %v930 = vxor.u32 %v920, 2147483648
        %v931 = vsel %vm929, %v930, %v921
        %v932 = vsel %vm925, %v928, %v931
        %v933 = vsel %vm922, nan, %v932
        %v934 = vand.u32 2147483647, %v411
        %vm935 = vcmp.le.f32.partialorder %v934, 0.7853982
        %vm936 = vcmp.lt.s32.totalorder %v411, 0
        %v937 = vand.u32 %v411, 2139095040
        %v938 = vshrl.u32 %v937, 23
        %v939 = vsub.s32 %v938, 127
        %v940 = vand.u32 2147483647, %v411
        %v941 = vand.u32 %v940, 8388607
        %v942 = vor.u32 %v941, 8388608
        %v943 = vsub.s32 0, %v942
        %v944 = vadd.s32 %v939, 1
        %vm945 = vcmp.gt.s32.totalorder %v944, 0
        %v946 = vsel %vm945, %v944, 0
        %v947 = vshrl.u32 %v946, 5
        %v948 = vand.u32 %v946, 31
        %v949 = vsub.s32 32, %v948
        %v950 = vshrl.u32 683565275, %v949
        %v951 = vshll.u32 683565275, %v948
        %v952 = vshrl.u32 2475754826, %v949
        %v953 = vor.u32 %v951, %v952
        %v954 = vshll.u32 2475754826, %v948
        %v955 = vshrl.u32 2131351028, %v949
        %v956 = vor.u32 %v954, %v955
        %v957 = vshll.u32 2131351028, %v948
        %v958 = vshrl.u32 2102212464, %v949
        %v959 = vor.u32 %v957, %v958
        %v960 = vshll.u32 2102212464, %v948
        %v961 = vshrl.u32 920167782, %v949
        %v962 = vor.u32 %v960, %v961
        %v963 = vshll.u32 920167782, %v948
        %v964 = vshrl.u32 1326507024, %v949
        %v965 = vor.u32 %v963, %v964
        %vm966 = vcmp.lt.s32.totalorder %v947, 1
        %vm967 = vcmp.lt.s32.totalorder %v947, 2
        %vm968 = vcmp.lt.s32.totalorder %v947, 3
        %vm969 = vcmp.lt.s32.totalorder %v947, 4
        %v970 = vsel %vm966, %v950, %v953
        %v971 = vsel %vm969, %v959, 2102212464
        %v972 = vsel %vm968, %v956, %v971
        %v973 = vsel %vm967, %v970, %v972
        %v974 = vsel %vm966, %v953, %v956
        %v975 = vsel %vm969, %v962, 920167782
        %v976 = vsel %vm968, %v959, %v975
        %v977 = vsel %vm967, %v974, %v976
        %v978 = vsel %vm966, %v956, %v959
        %v979 = vsel %vm969, %v965, 1326507024
        %v980 = vsel %vm968, %v962, %v979
        %v981 = vsel %vm967, %v978, %v980
        %v982 = vshll.u32 %v942, 8
        %v983 = vmul.u32.u64.compose %v982, %v981
        %v984 = vextract.low.u32 %v983
        %v985 = vextract.high.u32 %v983
        %v986 = vmul.u32.u64.compose %v982, %v977
        %v987 = vextract.low.u32 %v986
        %v988 = vextract.high.u32 %v986
        %v989 = vmul.u32 %v982, %v973
        %v990 = vadd.s32 %v985, %v987
        %vm991 = vc.u32 %v985, %v987
        %v992 = vadd.s32 %v988, 1
        %v993 = vsel %vm991, %v992, %v988
        %v994 = vadd.s32 %v989, %v993
        %v995 = vadd.s32 %v994, 536870912
        %v996 = vshrl.u32 %v995, 30
        %v997 = vshll.u32 %v996, 30
        %v998 = vsub.s32 %v994, %v997
        %vm999 = vcmp.lt.s32.totalorder %v998, 0
        %v1000 = vsub.s32 0, %v998
        %v1001 = vsel %vm999, %v1000, %v998
        %v1002 = vclz %v1001
        %v1003 = vsub.s32 %v1002, 2
        %vm1004 = vcmp.gt.s32.totalorder 0, %v1003
        %v1005 = vsel %vm1004, 0, %v1003
        %v1006 = vsub.s32 32, %v1005
        %v1007 = vshll.u32 %v998, %v1005
        %v1008 = vshrl.u32 %v990, %v1006
        %v1009 = vor.u32 %v1007, %v1008
        %v1010 = vsub.s32 4294967266, %v1005
        %v1011 = vadd.s32 %v1010, 127
        %v1012 = vshll.u32 %v1011, 23
        %v1013 = vor.u32 4788187, %v1012
        %v1014 = vand.u32 2147483647, %v1013
        %v1016 = vcvt.s32.f32 %v1009
        %v1017 = vmul.f32 %v1016, %v1014
        %v1018 = vxor.u32 %v1017, 2147483648
        %v1019 = vsel %vm936, %v1018, %v1017
        %v1020 = vsub.s32 4, %v996
        %v1021 = vsel %vm936, %v1020, %v996
        %v1022 = vsel %vm935, %v411, %v1019
        %v1023 = vsel %vm935, 0, %v1021
        %v1024 = vcosq.f32.pop %v1022
        %v1025 = vsinq.f32.pop %v1022
        %vm1026 = vweird.f32 %v411
        %v1027 = vadd.s32 %v1023, 3
        %v1028 = vand.u32 %v1027, 3
        %vm1029 = vcmp.lt.s32.totalorder %v1028, 2
        %vm1030 = vcmp.eq.s32.totalorder %v1028, 0
        %v1031 = vxor.u32 %v1025, 2147483648
        %v1032 = vsel %vm1030, %v1024, %v1031
        %vm1033 = vcmp.eq.s32.totalorder %v1028, 2
        %v1034 = vxor.u32 %v1024, 2147483648
        %v1035 = vsel %vm1033, %v1034, %v1025
        %v1036 = vsel %vm1029, %v1032, %v1035
        %v1037 = vsel %vm1026, nan, %v1036
        %v1038 = vand.u32 2147483647, %v412
        %vm1039 = vcmp.le.f32.partialorder %v1038, 0.7853982
        %vm1040 = vcmp.lt.s32.totalorder %v412, 0
        %v1041 = vand.u32 %v412, 2139095040
        %v1042 = vshrl.u32 %v1041, 23
        %v1043 = vsub.s32 %v1042, 127
        %v1044 = vand.u32 2147483647, %v412
        %v1045 = vand.u32 %v1044, 8388607
        %v1046 = vor.u32 %v1045, 8388608
        %v1047 = vsub.s32 0, %v1046
        %v1048 = vadd.s32 %v1043, 1
        %vm1049 = vcmp.gt.s32.totalorder %v1048, 0
        %v1050 = vsel %vm1049, %v1048, 0
        %v1051 = vshrl.u32 %v1050, 5
        %v1052 = vand.u32 %v1050, 31
        %v1053 = vsub.s32 32, %v1052
        %v1054 = vshrl.u32 683565275, %v1053
        %v1055 = vshll.u32 683565275, %v1052
        %v1056 = vshrl.u32 2475754826, %v1053
        %v1057 = vor.u32 %v1055, %v1056
        %v1058 = vshll.u32 2475754826, %v1052
        %v1059 = vshrl.u32 2131351028, %v1053
        %v1060 = vor.u32 %v1058, %v1059
        %v1061 = vshll.u32 2131351028, %v1052
        %v1062 = vshrl.u32 2102212464, %v1053
        %v1063 = vor.u32 %v1061, %v1062
        %v1064 = vshll.u32 2102212464, %v1052
        %v1065 = vshrl.u32 920167782, %v1053
        %v1066 = vor.u32 %v1064, %v1065
        %v1067 = vshll.u32 920167782, %v1052
        %v1068 = vshrl.u32 1326507024, %v1053
        %v1069 = vor.u32 %v1067, %v1068
        %vm1070 = vcmp.lt.s32.totalorder %v1051, 1
        %vm1071 = vcmp.lt.s32.totalorder %v1051, 2
        %vm1072 = vcmp.lt.s32.totalorder %v1051, 3
        %vm1073 = vcmp.lt.s32.totalorder %v1051, 4
        %v1074 = vsel %vm1070, %v1054, %v1057
        %v1075 = vsel %vm1073, %v1063, 2102212464
        %v1076 = vsel %vm1072, %v1060, %v1075
        %v1077 = vsel %vm1071, %v1074, %v1076
        %v1078 = vsel %vm1070, %v1057, %v1060
        %v1079 = vsel %vm1073, %v1066, 920167782
        %v1080 = vsel %vm1072, %v1063, %v1079
        %v1081 = vsel %vm1071, %v1078, %v1080
        %v1082 = vsel %vm1070, %v1060, %v1063
        %v1083 = vsel %vm1073, %v1069, 1326507024
        %v1084 = vsel %vm1072, %v1066, %v1083
        %v1085 = vsel %vm1071, %v1082, %v1084
        %v1086 = vshll.u32 %v1046, 8
        %v1087 = vmul.u32.u64.compose %v1086, %v1085
        %v1088 = vextract.low.u32 %v1087
        %v1089 = vextract.high.u32 %v1087
        %v1090 = vmul.u32.u64.compose %v1086, %v1081
        %v1091 = vextract.low.u32 %v1090
        %v1092 = vextract.high.u32 %v1090
        %v1093 = vmul.u32 %v1086, %v1077
        %v1094 = vadd.s32 %v1089, %v1091
        %vm1095 = vc.u32 %v1089, %v1091
        %v1096 = vadd.s32 %v1092, 1
        %v1097 = vsel %vm1095, %v1096, %v1092
        %v1098 = vadd.s32 %v1093, %v1097
        %v1099 = vadd.s32 %v1098, 536870912
        %v1100 = vshrl.u32 %v1099, 30
        %v1101 = vshll.u32 %v1100, 30
        %v1102 = vsub.s32 %v1098, %v1101
        %vm1103 = vcmp.lt.s32.totalorder %v1102, 0
        %v1104 = vsub.s32 0, %v1102
        %v1105 = vsel %vm1103, %v1104, %v1102
        %v1106 = vclz %v1105
        %v1107 = vsub.s32 %v1106, 2
        %vm1108 = vcmp.gt.s32.totalorder 0, %v1107
        %v1109 = vsel %vm1108, 0, %v1107
        %v1110 = vsub.s32 32, %v1109
        %v1111 = vshll.u32 %v1102, %v1109
        %v1112 = vshrl.u32 %v1094, %v1110
        %v1113 = vor.u32 %v1111, %v1112
        %v1114 = vsub.s32 4294967266, %v1109
        %v1115 = vadd.s32 %v1114, 127
        %v1116 = vshll.u32 %v1115, 23
        %v1117 = vor.u32 4788187, %v1116
        %v1118 = vand.u32 2147483647, %v1117
        %v1120 = vcvt.s32.f32 %v1113
        %v1121 = vmul.f32 %v1120, %v1118
        %v1122 = vxor.u32 %v1121, 2147483648
        %v1123 = vsel %vm1040, %v1122, %v1121
        %v1124 = vsub.s32 4, %v1100
        %v1125 = vsel %vm1040, %v1124, %v1100
        %v1126 = vsel %vm1039, %v412, %v1123
        %v1127 = vsel %vm1039, 0, %v1125
        %v1128 = vcosq.f32.pop %v1126
        %v1129 = vsinq.f32.pop %v1126
        %vm1130 = vweird.f32 %v412
        %v1131 = vadd.s32 %v1127, 3
        %v1132 = vand.u32 %v1131, 3
        %vm1133 = vcmp.lt.s32.totalorder %v1132, 2
        %vm1134 = vcmp.eq.s32.totalorder %v1132, 0
        %v1135 = vxor.u32 %v1129, 2147483648
        %v1136 = vsel %vm1134, %v1128, %v1135
        %vm1137 = vcmp.eq.s32.totalorder %v1132, 2
        %v1138 = vxor.u32 %v1128, 2147483648
        %v1139 = vsel %vm1137, %v1138, %v1129
        %v1140 = vsel %vm1133, %v1136, %v1139
        %v1141 = vsel %vm1130, nan, %v1140
        %v1142 = vand.u32 2147483647, %v413
        %vm1143 = vcmp.le.f32.partialorder %v1142, 0.7853982
        %vm1144 = vcmp.lt.s32.totalorder %v413, 0
        %v1145 = vand.u32 %v413, 2139095040
        %v1146 = vshrl.u32 %v1145, 23
        %v1147 = vsub.s32 %v1146, 127
        %v1148 = vand.u32 2147483647, %v413
        %v1149 = vand.u32 %v1148, 8388607
        %v1150 = vor.u32 %v1149, 8388608
        %v1151 = vsub.s32 0, %v1150
        %v1152 = vadd.s32 %v1147, 1
        %vm1153 = vcmp.gt.s32.totalorder %v1152, 0
        %v1154 = vsel %vm1153, %v1152, 0
        %v1155 = vshrl.u32 %v1154, 5
        %v1156 = vand.u32 %v1154, 31
        %v1157 = vsub.s32 32, %v1156
        %v1158 = vshrl.u32 683565275, %v1157
        %v1159 = vshll.u32 683565275, %v1156
        %v1160 = vshrl.u32 2475754826, %v1157
        %v1161 = vor.u32 %v1159, %v1160
        %v1162 = vshll.u32 2475754826, %v1156
        %v1163 = vshrl.u32 2131351028, %v1157
        %v1164 = vor.u32 %v1162, %v1163
        %v1165 = vshll.u32 2131351028, %v1156
        %v1166 = vshrl.u32 2102212464, %v1157
        %v1167 = vor.u32 %v1165, %v1166
        %v1168 = vshll.u32 2102212464, %v1156
        %v1169 = vshrl.u32 920167782, %v1157
        %v1170 = vor.u32 %v1168, %v1169
        %v1171 = vshll.u32 920167782, %v1156
        %v1172 = vshrl.u32 1326507024, %v1157
        %v1173 = vor.u32 %v1171, %v1172
        %vm1174 = vcmp.lt.s32.totalorder %v1155, 1
        %vm1175 = vcmp.lt.s32.totalorder %v1155, 2
        %vm1176 = vcmp.lt.s32.totalorder %v1155, 3
        %vm1177 = vcmp.lt.s32.totalorder %v1155, 4
        %v1178 = vsel %vm1174, %v1158, %v1161
        %v1179 = vsel %vm1177, %v1167, 2102212464
        %v1180 = vsel %vm1176, %v1164, %v1179
        %v1181 = vsel %vm1175, %v1178, %v1180
        %v1182 = vsel %vm1174, %v1161, %v1164
        %v1183 = vsel %vm1177, %v1170, 920167782
        %v1184 = vsel %vm1176, %v1167, %v1183
        %v1185 = vsel %vm1175, %v1182, %v1184
        %v1186 = vsel %vm1174, %v1164, %v1167
        %v1187 = vsel %vm1177, %v1173, 1326507024
        %v1188 = vsel %vm1176, %v1170, %v1187
        %v1189 = vsel %vm1175, %v1186, %v1188
        %v1190 = vshll.u32 %v1150, 8
        %v1191 = vmul.u32.u64.compose %v1190, %v1189
        %v1192 = vextract.low.u32 %v1191
        %v1193 = vextract.high.u32 %v1191
        %v1194 = vmul.u32.u64.compose %v1190, %v1185
        %v1195 = vextract.low.u32 %v1194
        %v1196 = vextract.high.u32 %v1194
        %v1197 = vmul.u32 %v1190, %v1181
        %v1198 = vadd.s32 %v1193, %v1195
        %vm1199 = vc.u32 %v1193, %v1195
        %v1200 = vadd.s32 %v1196, 1
        %v1201 = vsel %vm1199, %v1200, %v1196
        %v1202 = vadd.s32 %v1197, %v1201
        %v1203 = vadd.s32 %v1202, 536870912
        %v1204 = vshrl.u32 %v1203, 30
        %v1205 = vshll.u32 %v1204, 30
        %v1206 = vsub.s32 %v1202, %v1205
        %vm1207 = vcmp.lt.s32.totalorder %v1206, 0
        %v1208 = vsub.s32 0, %v1206
        %v1209 = vsel %vm1207, %v1208, %v1206
        %v1210 = vclz %v1209
        %v1211 = vsub.s32 %v1210, 2
        %vm1212 = vcmp.gt.s32.totalorder 0, %v1211
        %v1213 = vsel %vm1212, 0, %v1211
        %v1214 = vsub.s32 32, %v1213
        %v1215 = vshll.u32 %v1206, %v1213
        %v1216 = vshrl.u32 %v1198, %v1214
        %v1217 = vor.u32 %v1215, %v1216
        %v1218 = vsub.s32 4294967266, %v1213
        %v1219 = vadd.s32 %v1218, 127
        %v1220 = vshll.u32 %v1219, 23
        %v1221 = vor.u32 4788187, %v1220
        %v1222 = vand.u32 2147483647, %v1221
        %v1224 = vcvt.s32.f32 %v1217
        %v1225 = vmul.f32 %v1224, %v1222
        %v1226 = vxor.u32 %v1225, 2147483648
        %v1227 = vsel %vm1144, %v1226, %v1225
        %v1228 = vsub.s32 4, %v1204
        %v1229 = vsel %vm1144, %v1228, %v1204
        %v1230 = vsel %vm1143, %v413, %v1227
        %v1231 = vsel %vm1143, 0, %v1229
        %v1232 = vcosq.f32.pop %v1230
        %v1233 = vsinq.f32.pop %v1230
        %vm1234 = vweird.f32 %v413
        %v1235 = vadd.s32 %v1231, 3
        %v1236 = vand.u32 %v1235, 3
        %vm1237 = vcmp.lt.s32.totalorder %v1236, 2
        %vm1238 = vcmp.eq.s32.totalorder %v1236, 0
        %v1239 = vxor.u32 %v1233, 2147483648
        %v1240 = vsel %vm1238, %v1232, %v1239
        %vm1241 = vcmp.eq.s32.totalorder %v1236, 2
        %v1242 = vxor.u32 %v1232, 2147483648
        %v1243 = vsel %vm1241, %v1242, %v1233
        %v1244 = vsel %vm1237, %v1240, %v1243
        %v1245 = vsel %vm1234, nan, %v1244
        %v1246 = vld [vmem:[%s3] sm:$0xff]
        %v1247 = vld [vmem:[%s3 + $0x8] sm:$0xff]
        %v1248 = vld [vmem:[%s3 + $0x10] sm:$0xff]
        %v1249 = vld [vmem:[%s3 + $0x18] sm:$0xff]
        %v1250 = vld [vmem:[%s4] sm:$0xff]
        %v1251 = vld [vmem:[%s4 + $0x8] sm:$0xff]
        %v1252 = vld [vmem:[%s4 + $0x10] sm:$0xff]
        %v1253 = vld [vmem:[%s4 + $0x18] sm:$0xff]
        %1255 = vset.pattern.permute.xlu0 0
        %1256 = vperm.xlu0 %1255, %v1250
        %v1257 = vpop.permute.xlu0 %1256
        %1260 = vset.pattern.permute.xlu0 0
        %1261 = vperm.xlu0 %1260, %v1251
        %v1262 = vpop.permute.xlu0 %1261
        %1265 = vset.pattern.permute.xlu0 0
        %1266 = vperm.xlu0 %1265, %v1252
        %v1267 = vpop.permute.xlu0 %1266
        %1270 = vset.pattern.permute.xlu0 0
        %1271 = vperm.xlu0 %1270, %v1253
        %v1272 = vpop.permute.xlu0 %1271
        %vm1274 = vcmask 261120
        %v1276 = vsel %vm1274, %v1246, 0
        %v1279 = vsel %vm1274, %v1247, 0
        %v1282 = vsel %vm1274, %v1248, 0
        %v1285 = vsel %vm1274, %v1249, 0
        %1287 = vmatprep.subr.mxu0 %v621
        %1288 = vmatpush1.msra.mxu0 %v517
        %1289 = vmatprep.subr.mxu0 %v829
        %1290 = vmatpush1.msra.mxu0 %v725
        %1291 = vmatprep.subr.mxu0 %v1037
        %1292 = vmatpush1.msra.mxu0 %v933
        %1293 = vmatprep.subr.mxu0 %v1245
        %1294 = vmatpush1.msra.mxu0 %v1141
        %1295 = vmatprep.subr.mxu0 0.0
        %1296 = vmatpush1.msra.mxu0 0.0
        %1297 = vmatprep.subr.mxu0 0.0
        %1298 = vmatpush1.msra.mxu0 0.0
        %1299 = vmatprep.subr.mxu0 0.0
        %1300 = vmatpush1.msra.mxu0 0.0
        %1301 = vmatprep.subr.mxu0 0.0
        %1302 = vmatpush1.msra.mxu0 0.0
        %1303 = vmatprep.subr.mxu0 0.0
        %1304 = vmatpush1.msra.mxu0 0.0
        %1305 = vmatprep.subr.mxu0 0.0
        %1306 = vmatpush1.msra.mxu0 0.0
        %1307 = vmatprep.subr.mxu0 0.0
        %1308 = vmatpush1.msra.mxu0 0.0
        %1309 = vmatprep.subr.mxu0 0.0
        %1310 = vmatpush1.msra.mxu0 0.0
        %1311 = vmatprep.subr.mxu0 0.0
        %1312 = vmatpush1.msra.mxu0 0.0
        %1313 = vmatprep.subr.mxu0 0.0
        %1314 = vmatpush1.msra.mxu0 0.0
        %1315 = vmatprep.subr.mxu0 0.0
        %1316 = vmatpush1.msra.mxu0 0.0
        %1317 = vmatprep.subr.mxu0 0.0
        %1318 = vmatpush1.msra.mxu0 0.0
        %1319 = vmatprep.subr.mxu0 0.0
        %1320 = vmatpush1.msra.mxu0 0.0
        %1321 = vmatprep.subr.mxu0 0.0
        %1322 = vmatpush1.msra.mxu0 0.0
        %1323 = vmatprep.subr.mxu0 0.0
        %1324 = vmatpush1.msra.mxu0 0.0
        %1325 = vmatprep.subr.mxu0 0.0
        %1326 = vmatpush1.msra.mxu0 0.0
        %1327 = vmatprep.subr.mxu0 0.0
        %1328 = vmatpush1.msra.mxu0 0.0
        %1329 = vmatprep.subr.mxu0 0.0
        %1330 = vmatpush1.msra.mxu0 0.0
        %1331 = vmatprep.subr.mxu0 0.0
        %1332 = vmatpush1.msra.mxu0 0.0
        %1333 = vmatprep.subr.mxu0 0.0
        %1334 = vmatpush1.msra.mxu0 0.0
        %1335 = vmatprep.subr.mxu0 0.0
        %1336 = vmatpush1.msra.mxu0 0.0
        %1337 = vmatprep.subr.mxu0 0.0
        %1338 = vmatpush1.msra.mxu0 0.0
        %1339 = vmatprep.subr.mxu0 0.0
        %1340 = vmatpush1.msra.mxu0 0.0
        %1341 = vmatprep.subr.mxu0 0.0
        %1342 = vmatpush1.msra.mxu0 0.0
        %1343 = vmatprep.subr.mxu0 0.0
        %1344 = vmatpush1.msra.mxu0 0.0
        %1345 = vmatprep.subr.mxu0 0.0
        %1346 = vmatpush1.msra.mxu0 0.0
        %1347 = vmatprep.subr.mxu0 0.0
        %1348 = vmatpush1.msra.mxu0 0.0
        %1349 = vmatprep.subr.mxu0 0.0
        %1350 = vmatpush1.msra.mxu0 0.0
        %1351 = vmatprep.mubr.f32.mxu0 0.0
        %1352 = vmatmul.mubr.f32.gmra.mrb[0].mxu0 %v1276
        %v1353 = vpop.f32.mrb[0].mxu0
        %v1354 = vadd.f32 %v1257, %v1353
        %v1355 = vpop.f32.mrb[0].mxu0
        %v1356 = vadd.f32 %v1257, %v1355
        %1357 = vmatprep.mubr.f32.mxu0 0.0
        %1358 = vmatmul.mubr.f32.gmra.mrb[0].mxu0 %v1279
        %v1359 = vpop.f32.mrb[0].mxu0
        %v1360 = vadd.f32 %v1262, %v1359
        %v1361 = vpop.f32.mrb[0].mxu0
        %v1362 = vadd.f32 %v1262, %v1361
        %1363 = vmatprep.mubr.f32.mxu0 0.0
        %1364 = vmatmul.mubr.f32.gmra.mrb[0].mxu0 %v1282
        %v1365 = vpop.f32.mrb[0].mxu0
        %v1366 = vadd.f32 %v1267, %v1365
        %v1367 = vpop.f32.mrb[0].mxu0
        %v1368 = vadd.f32 %v1267, %v1367
        %1369 = vmatprep.mubr.f32.mxu0 0.0
        %1370 = vmatmul.mubr.f32.gmra.mrb[0].mxu0 %v1285
        %v1371 = vpop.f32.mrb[0].mxu0
        %v1372 = vadd.f32 %v1272, %v1371
        %v1373 = vpop.f32.mrb[0].mxu0
        %v1374 = vadd.f32 %v1272, %v1373
        %1375 = vdwg.mxu0
        %v1376 = vmax.f32 %v1354, 0.0
        %v1377 = vmax.f32 %v1356, 0.0
        %v1378 = vmax.f32 %v1360, 0.0
        %v1379 = vmax.f32 %v1362, 0.0
        %v1380 = vmax.f32 %v1366, 0.0
        %v1381 = vmax.f32 %v1368, 0.0
        %v1382 = vmax.f32 %v1372, 0.0
        %v1383 = vmax.f32 %v1374, 0.0
        %v1384 = vld [vmem:[%s5] sm:$0xf]
        %v1385 = vld [vmem:[%s6] sm:$0xf]
        %1387 = vset.pattern.permute.xlu0 0
        %1388 = vperm.xlu0 %1387, %v1385
        %v1389 = vpop.permute.xlu0 %1388
        %v1392 = vsel %vm1274, %v1384, 0
        %1394 = vmatprep.subr.mxu0 %v1377
        %1395 = vmatpush1.msra.mxu0 %v1376
        %1396 = vmatprep.subr.mxu0 %v1379
        %1397 = vmatpush1.msra.mxu0 %v1378
        %1398 = vmatprep.subr.mxu0 %v1381
        %1399 = vmatpush1.msra.mxu0 %v1380
        %1400 = vmatprep.subr.mxu0 %v1383
        %1401 = vmatpush1.msra.mxu0 %v1382
        %1402 = vmatprep.subr.mxu0 0.0
        %1403 = vmatpush1.msra.mxu0 0.0
        %1404 = vmatprep.subr.mxu0 0.0
        %1405 = vmatpush1.msra.mxu0 0.0
        %1406 = vmatprep.subr.mxu0 0.0
        %1407 = vmatpush1.msra.mxu0 0.0
        %1408 = vmatprep.subr.mxu0 0.0
        %1409 = vmatpush1.msra.mxu0 0.0
        %1410 = vmatprep.subr.mxu0 0.0
        %1411 = vmatpush1.msra.mxu0 0.0
        %1412 = vmatprep.subr.mxu0 0.0
        %1413 = vmatpush1.msra.mxu0 0.0
        %1414 = vmatprep.subr.mxu0 0.0
        %1415 = vmatpush1.msra.mxu0 0.0
        %1416 = vmatprep.subr.mxu0 0.0
        %1417 = vmatpush1.msra.mxu0 0.0
        %1418 = vmatprep.subr.mxu0 0.0
        %1419 = vmatpush1.msra.mxu0 0.0
        %1420 = vmatprep.subr.mxu0 0.0
        %1421 = vmatpush1.msra.mxu0 0.0
        %1422 = vmatprep.subr.mxu0 0.0
        %1423 = vmatpush1.msra.mxu0 0.0
        %1424 = vmatprep.subr.mxu0 0.0
        %1425 = vmatpush1.msra.mxu0 0.0
        %1426 = vmatprep.subr.mxu0 0.0
        %1427 = vmatpush1.msra.mxu0 0.0
        %1428 = vmatprep.subr.mxu0 0.0
        %1429 = vmatpush1.msra.mxu0 0.0
        %1430 = vmatprep.subr.mxu0 0.0
        %1431 = vmatpush1.msra.mxu0 0.0
        %1432 = vmatprep.subr.mxu0 0.0
        %1433 = vmatpush1.msra.mxu0 0.0
        %1434 = vmatprep.subr.mxu0 0.0
        %1435 = vmatpush1.msra.mxu0 0.0
        %1436 = vmatprep.subr.mxu0 0.0
        %1437 = vmatpush1.msra.mxu0 0.0
        %1438 = vmatprep.subr.mxu0 0.0
        %1439 = vmatpush1.msra.mxu0 0.0
        %1440 = vmatprep.subr.mxu0 0.0
        %1441 = vmatpush1.msra.mxu0 0.0
        %1442 = vmatprep.subr.mxu0 0.0
        %1443 = vmatpush1.msra.mxu0 0.0
        %1444 = vmatprep.subr.mxu0 0.0
        %1445 = vmatpush1.msra.mxu0 0.0
        %1446 = vmatprep.subr.mxu0 0.0
        %1447 = vmatpush1.msra.mxu0 0.0
        %1448 = vmatprep.subr.mxu0 0.0
        %1449 = vmatpush1.msra.mxu0 0.0
        %1450 = vmatprep.subr.mxu0 0.0
        %1451 = vmatpush1.msra.mxu0 0.0
        %1452 = vmatprep.subr.mxu0 0.0
        %1453 = vmatpush1.msra.mxu0 0.0
        %1454 = vmatprep.subr.mxu0 0.0
        %1455 = vmatpush1.msra.mxu0 0.0
        %1456 = vmatprep.subr.mxu0 0.0
        %1457 = vmatpush1.msra.mxu0 0.0
        %1458 = vmatprep.mubr.f32.mxu0 0.0
        %1459 = vmatmul.mubr.f32.gmra.mrb[0].mxu0 %v1392
        %v1460 = vpop.f32.mrb[0].mxu0
        %v1461 = vadd.f32 %v1389, %v1460
        %v1462 = vpop.f32.mrb[0].mxu0
        %v1463 = vadd.f32 %v1389, %v1462
        %1464 = vdwg.mxu0
        %v1467 = vcombine.low %v1461, %v1463
        %1469 = vst [vmem:[%s272] sm:$0xff] %v1467
        %s1470 = sand.u32 %s181, 1
        %s1471 = scalar_lea.sflag [#allocation3], %s1470
        %s1472 = sand.u32 %s181, 1
        %s1473 = smul.addr %s1472, 8
        %s1474 = scalar_lea.vmem [#allocation2], %s1473
        // Predicated region
        $region49: #{tpu_custom_call.1} parent=47 // pred_check
          %p1475 = pneg %p191
        $region50: #{tpu_custom_call.1} parent=47 // pred_check_branch
          %1477 = sbr.rel (%p1475) target = $region52
        $region51: #{tpu_custom_call.1} parent=47 // pred_region
          %s1478 = smul.u32 2, %s21
          %s1480 = ssub.s32 128, 128
          %1481 = vsyncadd %s1471, %s1480
          %s1482 = smul.addr %s1478, 64
          %s1483 = scalar_lea.hbm %s7, %s1482
          %s1485 = sshll.u32 %s1474, 4
          %s1486 = int_to_ptr.vmem [resolvable:$true] %s1485
          %1488 = dma.vmem_to_hbm [thread:$0]  %s1486, 128, %s1483, %s1471
        $region52: #{tpu_custom_call.1} parent=47 // pred_fallthru
          _
      $region48: #{tpu_custom_call.1} parent=5 // pred_fallthru
        _
      %p1489 = scmp.le.s32.totalorder 2, %s16
      // Predicated region
      $region53: #{tpu_custom_call.1} parent=5 // pred_check
        %p1490 = pneg %p1489
      $region54: #{tpu_custom_call.1} parent=5 // pred_check_branch
        %1492 = sbr.rel (%p1490) target = $region56
      $region55: #{tpu_custom_call.1} parent=5 // pred_region
        %s1493 = ssub.s32 %s16, 2
        // Predicated region
        $region57: #{tpu_custom_call.1} parent=55 // pred_check
          %p1494 = pneg %p197
        $region58: #{tpu_custom_call.1} parent=55 // pred_check_branch
          %1496 = sbr.rel (%p1494) target = $region60
        $region59: #{tpu_custom_call.1} parent=55 // pred_region
          %s1497 = sand.u32 %s182, 1
          %s1498 = scalar_lea.sflag [#allocation3], %s1497
          %s1499 = sand.u32 %s182, 1
          %s1500 = smul.addr %s1499, 8
          %s1501 = scalar_lea.vmem [#allocation2], %s1500
          %1502 = dma.done %s1498, 128
        $region60: #{tpu_custom_call.1} parent=55 // pred_fallthru
          _
      $region56: #{tpu_custom_call.1} parent=5 // pred_fallthru
        _
    $region6: #{tpu_custom_call.1} parent=1 // loop_footer
      %s20 = sadd.s32 1, %s16
    $region7: #{tpu_custom_call.1} parent=1 // loop_footer_branch
      %15 = sbr.rel target = $region3
    $region8: #{tpu_custom_call.1} parent=1 // loop_exit
      _
    %1503 = vsyncpa [#allocation3], 1
    %s1504 = scalar_lea.sflag [#allocation3], 1
    %1505 = vsyncpa %s1504, 1

</llo_original>
